<compile_context>
chip_gen: v5e
topology: v5e:2x2
jax: 0.10.0
libtpu: 0.0.40
codegen_flags: <defaults>
</compile_context>

<pallas_src>
import jax
import jax.numpy as jnp
from jax.experimental import pallas as pl
from jax.experimental.pallas import tpu as pltpu


BN_EPS = 1e-5


def _predictor_kernel(x1_ref, x2_ref, w1_ref, g_ref, b_ref, w2_ref, b2_ref,
                      out_ref):
    """One pred_dim-tile grid step of the fused SimSiam predictor (both views)."""
    j = pl.program_id(0)                     # pred_dim tile index (reduction axis)
    B = x1_ref.shape[0]

    # Merge the two views into a single (2B, dim) MXU operand.  The f32->bf16
    # cast happens here on the VPU (no extra HBM pass in the wrapper), and
    # M = 2B doubles MXU row occupancy vs per-view matmuls.
    x = jnp.concatenate(
        [x1_ref[...].astype(jnp.bfloat16), x2_ref[...].astype(jnp.bfloat16)],
        axis=0)

    # --- Linear 1 (no bias): bf16 operands on the MXU, f32 accumulation. ---
    # (the .astype is a no-op when weights were prepared as bf16 once outside
    # the training step; it also tolerates f32 weights without a wrapper cast.)
    h = jnp.dot(x, w1_ref[...].astype(jnp.bfloat16),
                preferred_element_type=jnp.float32)          # (2B, pred_tile) f32

    # --- BatchNorm1d (training mode, biased batch stats) + ReLU, per view. ---
    # Each grid step sees the FULL batch for its pred_dim column slice, so the
    # per-feature batch statistics are exact.  sum and sum-of-squares are fused
    # into one pass over the tile (var = E[x^2] - mean^2, clamped at 0).
    def bn_relu(hv):                                          # (B, pred_tile) f32
        mean = jnp.mean(hv, axis=0, keepdims=True)
        mean_sq = jnp.mean(hv * hv, axis=0, keepdims=True)
        var = jnp.maximum(mean_sq - mean * mean, 0.0)
        scale = g_ref[...] * jax.lax.rsqrt(var + BN_EPS)      # gamma folded in
        act = jnp.maximum((hv - mean) * scale + b_ref[...], 0.0)
        return act.astype(jnp.bfloat16)                       # bf16 for the MXU

    h_act = jnp.concatenate([bn_relu(h[:B, :]), bn_relu(h[B:, :])], axis=0)

    # --- Linear 2 (with bias): split-K accumulation into the resident
    # (2B, dim) f32 output block.  Bias folded into the first reduction step
    # (no broadcast-init + re-read of the block). ---
    partial = jnp.dot(h_act, w2_ref[...].astype(jnp.bfloat16),
                      preferred_element_type=jnp.float32)

    @pl.when(j == 0)
    def _():
        out_ref[...] = partial + b2_ref[...]

    @pl.when(j > 0)
    def _():
        out_ref[...] += partial


def _vmem_estimate_bytes(B, dim, pred_tile, w_bytes):
    """Rough per-core VMEM footprint (double-buffered tiles + intermediates)."""
    f32, bf16 = 4, 2
    est = 0
    est += 2 * (B * dim * f32) * 2            # x1, x2 input blocks (2 buffers each)
    est += (2 * B) * dim * f32 * 2            # (2B, dim) f32 output block
    est += dim * pred_tile * w_bytes * 2      # w1 column slice
    est += pred_tile * dim * w_bytes * 2      # w2 row slice
    est += (2 * pred_tile + dim) * f32 * 2    # gamma / beta / b2
    est += 2 * B * dim * bf16                 # merged bf16 x
    est += 2 * B * pred_tile * (f32 + bf16)   # h + h_act intermediates
    est += 2 * B * dim * f32                  # partial product
    return est


def simsiam_predictor(x1, x2, w1, gamma, beta, w2, b2, *, pred_tile=None):
    """Fused SimSiam predictor for both views in a single pallas_call.

    x1, x2:  (B, dim) float32 (cast to bf16 inside the kernel)
    w1:      (dim, pred_dim)   (pass bf16 from prepare_params; f32 also works)
    gamma:   (1, pred_dim)     BN scale (f32)
    beta:    (1, pred_dim)     BN shift (f32)
    w2:      (pred_dim, dim)
    b2:      (1, dim)          bias (f32)
    returns: p1, p2  each (B, dim) float32
    """
    B, dim = x1.shape
    assert x2.shape == (B, dim)
    assert B % 8 == 0, "batch must be a multiple of 8 (sublane tiling)"
    pred_dim = w1.shape[1]
    w_bytes = jnp.dtype(w1.dtype).itemsize

    if pred_tile is None:
        # Prefer a single reduction step (whole pred_dim resident); shrink only
        # if the VMEM estimate would not comfortably fit v7x's 64 MiB.
        pred_tile = pred_dim
        budget = 40 * 2**20
        while (_vmem_estimate_bytes(B, dim, pred_tile, w_bytes) > budget
               and pred_tile % 256 == 0):
            pred_tile //= 2
    assert pred_dim % pred_tile == 0, "pred_dim must be divisible by pred_tile"
    assert pred_tile == pred_dim or pred_tile % 128 == 0
    n_p = pred_dim // pred_tile

    est = _vmem_estimate_bytes(B, dim, pred_tile, w_bytes)
    vmem_limit = int(min(max(1.75 * est, 16 * 2**20), 60 * 2**20))

    out = pl.pallas_call(
        _predictor_kernel,
        out_shape=jax.ShapeDtypeStruct((2 * B, dim), jnp.float32),
        grid_spec=pltpu.PrefetchScalarGridSpec(
            num_scalar_prefetch=0,
            grid=(n_p,),
            in_specs=[
                # x1 / x2: full view, resident across pred_dim tiles.
                pl.BlockSpec((B, dim), lambda j: (0, 0)),
                pl.BlockSpec((B, dim), lambda j: (0, 0)),
                # w1 column slice for this pred_dim tile.
                pl.BlockSpec((dim, pred_tile), lambda j: (0, j)),
                # BN gamma / beta slices.
                pl.BlockSpec((1, pred_tile), lambda j: (0, j)),
                pl.BlockSpec((1, pred_tile), lambda j: (0, j)),
                # w2 row slice (K-slice of the second matmul).
                pl.BlockSpec((pred_tile, dim), lambda j: (j, 0)),
                # b2 bias (whole, resident).
                pl.BlockSpec((1, dim), lambda j: (0, 0)),
            ],
            # Output block revisited across the pred_dim axis -> accumulator.
            out_specs=pl.BlockSpec((2 * B, dim), lambda j: (0, 0)),
        ),
        compiler_params=pltpu.CompilerParams(
            dimension_semantics=("arbitrary",),
            vmem_limit_bytes=vmem_limit,
        ),
    )(x1, x2, w1, gamma, beta, w2, b2)
    return out[:B], out[B:]


def simsiam_forward(x1, x2, params, *, pred_tile=None):
    """SimSiam.forward with Identity encoder: returns (p1, p2, z1, z2)."""
    z1, z2 = x1, x2                               # encoder = nn.Identity()
    p1, p2 = simsiam_predictor(z1, z2, *params, pred_tile=pred_tile)
    # z.detach() -> stop_gradient in JAX.
    return p1, p2, jax.lax.stop_gradient(z1), jax.lax.stop_gradient(z2)


def init_params(key, dim, pred_dim):
    k1, k2, k3 = jax.random.split(key, 3)
    w1 = 0.02 * jax.random.normal(k1, (dim, pred_dim), jnp.float32)
    gamma = jnp.ones((1, pred_dim), jnp.float32)
    beta = jnp.zeros((1, pred_dim), jnp.float32)
    w2 = 0.02 * jax.random.normal(k2, (pred_dim, dim), jnp.float32)
    b2 = 0.01 * jax.random.normal(k3, (1, dim), jnp.float32)
    return (w1, gamma, beta, w2, b2)


def prepare_params(params):
    """One-time bf16 cast of the matmul weights (call ONCE, outside the step)."""
    w1, gamma, beta, w2, b2 = params
    return (w1.astype(jnp.bfloat16), gamma, beta, w2.astype(jnp.bfloat16), b2)


if __name__ == "__main__":
    # Small shapes consistent with the module (defaults dim=2048, pred_dim=512;
    # scaled down, keeping TPU-friendly 8/128 multiples).
    B, DIM, PRED_DIM = 64, 256, 256

    key = jax.random.PRNGKey(0)
    kx1, kx2, kp = jax.random.split(key, 3)
    x1 = jax.random.normal(kx1, (B, DIM), jnp.float32)
    x2 = jax.random.normal(kx2, (B, DIM), jnp.float32)
    params_f32 = init_params(kp, DIM, PRED_DIM)
    params = prepare_params(params_f32)   # persistent bf16 weights, cast once

    # Default path: pred_tile == pred_dim -> single reduction step.
    p1, p2, z1, z2 = simsiam_forward(x1, x2, params)
    # Explicit split-K path (pred_tile=128) to exercise the accumulator branch.
    q1, q2, _, _ = simsiam_forward(x1, x2, params, pred_tile=128)
    jax.block_until_ready((p1, p2, z1, z2, q1, q2))

    # Pure-JAX reference with the same bf16-matmul / f32-BN math as the kernel.
    def ref_predictor(x, w1, g, b, w2, b2):
        h = jnp.dot(x.astype(jnp.bfloat16), w1.astype(jnp.bfloat16),
                    preferred_element_type=jnp.float32)
        mean = h.mean(axis=0, keepdims=True)
        var = ((h - mean) ** 2).mean(axis=0, keepdims=True)
        h = (h - mean) * (g * jax.lax.rsqrt(var + BN_EPS)) + b
        h = jnp.maximum(h, 0.0).astype(jnp.bfloat16)
        return jnp.dot(h, w2.astype(jnp.bfloat16),
                       preferred_element_type=jnp.float32) + b2

    ref_p1 = ref_predictor(x1, *params_f32)
    ref_p2 = ref_predictor(x2, *params_f32)
    assert p1.shape == (B, DIM) and p2.shape == (B, DIM)
    for got1, got2 in ((p1, p2), (q1, q2)):
        assert jnp.allclose(got1, ref_p1, atol=2e-3, rtol=2e-3), "p1 mismatch"
        assert jnp.allclose(got2, ref_p2, atol=2e-3, rtol=2e-3), "p2 mismatch"
    assert jnp.array_equal(z1, x1) and jnp.array_equal(z2, x2)

    print("KERNEL_OK")
</pallas_src>

<mosaic_0001>
module attributes {stable_mosaic.version = 11 : i64} {
  func.func @_predictor_kernel(%arg0: i32, %arg1: memref<64x256xf32, #tpu.memory_space<vmem>>, %arg2: memref<64x256xf32, #tpu.memory_space<vmem>>, %arg3: memref<256x256xbf16, #tpu.memory_space<vmem>>, %arg4: memref<1x256xf32, #tpu.memory_space<vmem>>, %arg5: memref<1x256xf32, #tpu.memory_space<vmem>>, %arg6: memref<256x256xbf16, #tpu.memory_space<vmem>>, %arg7: memref<1x256xf32, #tpu.memory_space<vmem>>, %arg8: memref<128x256xf32, #tpu.memory_space<vmem>>) attributes {dimension_semantics = [#tpu.dimension_semantics<arbitrary>], iteration_bounds = array<i64: 1>, scalar_prefetch = 0 : i64, scratch_operands = 0 : i64, tpu.core_type = #tpu.core_type<tc>, window_params = [{pipeline_mode = #tpu.pipeline_mode<synchronous>, transform_indices = @transform_0, window_bounds = array<i64: 64, 256>}, {pipeline_mode = #tpu.pipeline_mode<synchronous>, transform_indices = @transform_1, window_bounds = array<i64: 64, 256>}, {transform_indices = @transform_2, window_bounds = array<i64: 256, 256>}, {transform_indices = @transform_3, window_bounds = array<i64: 1, 256>}, {transform_indices = @transform_4, window_bounds = array<i64: 1, 256>}, {transform_indices = @transform_5, window_bounds = array<i64: 256, 256>}, {pipeline_mode = #tpu.pipeline_mode<synchronous>, transform_indices = @transform_6, window_bounds = array<i64: 1, 256>}, {pipeline_mode = #tpu.pipeline_mode<synchronous>, transform_indices = @transform_7, window_bounds = array<i64: 128, 256>}]} {
    %c0 = arith.constant 0 : index
    %c0_0 = arith.constant 0 : index
    %0 = vector.load %arg1[%c0, %c0_0] : memref<64x256xf32, #tpu.memory_space<vmem>>, vector<64x256xf32>
    %1 = arith.truncf %0 : vector<64x256xf32> to vector<64x256xbf16>
    %c0_1 = arith.constant 0 : index
    %c0_2 = arith.constant 0 : index
    %2 = vector.load %arg2[%c0_1, %c0_2] : memref<64x256xf32, #tpu.memory_space<vmem>>, vector<64x256xf32>
    %3 = arith.truncf %2 : vector<64x256xf32> to vector<64x256xbf16>
    %4 = tpu.concatenate %1, %3 in 0 : vector<64x256xbf16>, vector<64x256xbf16> -> vector<128x256xbf16>
    %c0_3 = arith.constant 0 : index
    %c0_4 = arith.constant 0 : index
    %5 = vector.load %arg3[%c0_3, %c0_4] : memref<256x256xbf16, #tpu.memory_space<vmem>>, vector<256x256xbf16>
    %cst = arith.constant dense<0.000000e+00> : vector<128x256xf32>
    %6 = tpu.matmul %4, %5, %cst {dimension_numbers = #tpu.dot_dimension_numbers<[1], [0], [0], [1], [0, 0, 1, 1], [], []>} : vector<128x256xbf16>, vector<256x256xbf16>, vector<128x256xf32> -> vector<128x256xf32>
    %7 = vector.extract_strided_slice %6 {offsets = [0, 0], sizes = [64, 256], strides = [1, 1]} : vector<128x256xf32> to vector<64x256xf32>
    %cst_5 = arith.constant dense<0.000000e+00> : vector<256xf32>
    %8 = vector.multi_reduction <add>, %7, %cst_5 [0] : vector<64x256xf32> to vector<256xf32>
    %9 = vector.shape_cast %8 : vector<256xf32> to vector<1x256xf32>
    %cst_6 = arith.constant 6.400000e+01 : f32
    %10 = vector.broadcast %cst_6 : f32 to vector<1x256xf32>
    %11 = arith.divf %9, %10 : vector<1x256xf32>
    %12 = arith.mulf %7, %7 : vector<64x256xf32>
    %cst_7 = arith.constant dense<0.000000e+00> : vector<256xf32>
    %13 = vector.multi_reduction <add>, %12, %cst_7 [0] : vector<64x256xf32> to vector<256xf32>
    %14 = vector.shape_cast %13 : vector<256xf32> to vector<1x256xf32>
    %cst_8 = arith.constant 6.400000e+01 : f32
    %15 = vector.broadcast %cst_8 : f32 to vector<1x256xf32>
    %16 = arith.divf %14, %15 : vector<1x256xf32>
    %17 = arith.mulf %11, %11 : vector<1x256xf32>
    %18 = arith.subf %16, %17 : vector<1x256xf32>
    %cst_9 = arith.constant 0.000000e+00 : f32
    %19 = vector.broadcast %cst_9 : f32 to vector<1x256xf32>
    %20 = arith.maximumf %18, %19 : vector<1x256xf32>
    %c0_10 = arith.constant 0 : index
    %c0_11 = arith.constant 0 : index
    %21 = vector.load %arg4[%c0_10, %c0_11] : memref<1x256xf32, #tpu.memory_space<vmem>>, vector<1x256xf32>
    %cst_12 = arith.constant 9.99999974E-6 : f32
    %22 = vector.broadcast %cst_12 : f32 to vector<1x256xf32>
    %23 = arith.addf %20, %22 : vector<1x256xf32>
    %24 = math.rsqrt %23 : vector<1x256xf32>
    %25 = arith.mulf %21, %24 : vector<1x256xf32>
    %26 = vector.broadcast %11 : vector<1x256xf32> to vector<64x256xf32>
    %27 = arith.subf %7, %26 : vector<64x256xf32>
    %28 = vector.broadcast %25 : vector<1x256xf32> to vector<64x256xf32>
    %29 = arith.mulf %27, %28 : vector<64x256xf32>
    %c0_13 = arith.constant 0 : index
    %c0_14 = arith.constant 0 : index
    %30 = vector.load %arg5[%c0_13, %c0_14] : memref<1x256xf32, #tpu.memory_space<vmem>>, vector<1x256xf32>
    %31 = vector.broadcast %30 : vector<1x256xf32> to vector<64x256xf32>
    %32 = arith.addf %29, %31 : vector<64x256xf32>
    %cst_15 = arith.constant 0.000000e+00 : f32
    %33 = vector.broadcast %cst_15 : f32 to vector<64x256xf32>
    %34 = arith.maximumf %32, %33 : vector<64x256xf32>
    %35 = arith.truncf %34 : vector<64x256xf32> to vector<64x256xbf16>
    %36 = vector.extract_strided_slice %6 {offsets = [64, 0], sizes = [64, 256], strides = [1, 1]} : vector<128x256xf32> to vector<64x256xf32>
    %cst_16 = arith.constant dense<0.000000e+00> : vector<256xf32>
    %37 = vector.multi_reduction <add>, %36, %cst_16 [0] : vector<64x256xf32> to vector<256xf32>
    %38 = vector.shape_cast %37 : vector<256xf32> to vector<1x256xf32>
    %cst_17 = arith.constant 6.400000e+01 : f32
    %39 = vector.broadcast %cst_17 : f32 to vector<1x256xf32>
    %40 = arith.divf %38, %39 : vector<1x256xf32>
    %41 = arith.mulf %36, %36 : vector<64x256xf32>
    %cst_18 = arith.constant dense<0.000000e+00> : vector<256xf32>
    %42 = vector.multi_reduction <add>, %41, %cst_18 [0] : vector<64x256xf32> to vector<256xf32>
    %43 = vector.shape_cast %42 : vector<256xf32> to vector<1x256xf32>
    %cst_19 = arith.constant 6.400000e+01 : f32
    %44 = vector.broadcast %cst_19 : f32 to vector<1x256xf32>
    %45 = arith.divf %43, %44 : vector<1x256xf32>
    %46 = arith.mulf %40, %40 : vector<1x256xf32>
    %47 = arith.subf %45, %46 : vector<1x256xf32>
    %cst_20 = arith.constant 0.000000e+00 : f32
    %48 = vector.broadcast %cst_20 : f32 to vector<1x256xf32>
    %49 = arith.maximumf %47, %48 : vector<1x256xf32>
    %c0_21 = arith.constant 0 : index
    %c0_22 = arith.constant 0 : index
    %50 = vector.load %arg4[%c0_21, %c0_22] : memref<1x256xf32, #tpu.memory_space<vmem>>, vector<1x256xf32>
    %cst_23 = arith.constant 9.99999974E-6 : f32
    %51 = vector.broadcast %cst_23 : f32 to vector<1x256xf32>
    %52 = arith.addf %49, %51 : vector<1x256xf32>
    %53 = math.rsqrt %52 : vector<1x256xf32>
    %54 = arith.mulf %50, %53 : vector<1x256xf32>
    %55 = vector.broadcast %40 : vector<1x256xf32> to vector<64x256xf32>
    %56 = arith.subf %36, %55 : vector<64x256xf32>
    %57 = vector.broadcast %54 : vector<1x256xf32> to vector<64x256xf32>
    %58 = arith.mulf %56, %57 : vector<64x256xf32>
    %c0_24 = arith.constant 0 : index
    %c0_25 = arith.constant 0 : index
    %59 = vector.load %arg5[%c0_24, %c0_25] : memref<1x256xf32, #tpu.memory_space<vmem>>, vector<1x256xf32>
    %60 = vector.broadcast %59 : vector<1x256xf32> to vector<64x256xf32>
    %61 = arith.addf %58, %60 : vector<64x256xf32>
    %cst_26 = arith.constant 0.000000e+00 : f32
    %62 = vector.broadcast %cst_26 : f32 to vector<64x256xf32>
    %63 = arith.maximumf %61, %62 : vector<64x256xf32>
    %64 = arith.truncf %63 : vector<64x256xf32> to vector<64x256xbf16>
    %65 = tpu.concatenate %35, %64 in 0 : vector<64x256xbf16>, vector<64x256xbf16> -> vector<128x256xbf16>
    %c0_27 = arith.constant 0 : index
    %c0_28 = arith.constant 0 : index
    %66 = vector.load %arg6[%c0_27, %c0_28] : memref<256x256xbf16, #tpu.memory_space<vmem>>, vector<256x256xbf16>
    %cst_29 = arith.constant dense<0.000000e+00> : vector<128x256xf32>
    %67 = tpu.matmul %65, %66, %cst_29 {dimension_numbers = #tpu.dot_dimension_numbers<[1], [0], [0], [1], [0, 0, 1, 1], [], []>} : vector<128x256xbf16>, vector<256x256xbf16>, vector<128x256xf32> -> vector<128x256xf32>
    %c0_i32 = arith.constant 0 : i32
    %68 = arith.cmpi eq, %arg0, %c0_i32 : i32
    %69 = arith.extui %68 : i1 to i32
    %c0_i32_30 = arith.constant 0 : i32
    %70 = arith.cmpi ne, %69, %c0_i32_30 : i32
    scf.if %70 {
      %c0_33 = arith.constant 0 : index
      %c0_34 = arith.constant 0 : index
      %74 = vector.load %arg7[%c0_33, %c0_34] : memref<1x256xf32, #tpu.memory_space<vmem>>, vector<1x256xf32>
      %75 = vector.broadcast %74 : vector<1x256xf32> to vector<128x256xf32>
      %76 = arith.addf %67, %75 : vector<128x256xf32>
      %c0_35 = arith.constant 0 : index
      %c0_36 = arith.constant 0 : index
      %77 = vector.load %arg8[%c0_35, %c0_36] : memref<128x256xf32, #tpu.memory_space<vmem>>, vector<128x256xf32>
      tpu.vector_store %arg8[%c0_35, %c0_36], %76 {strides = array<i32>} : memref<128x256xf32, #tpu.memory_space<vmem>>, vector<128x256xf32>,
    } else {
    }
    %c0_i32_31 = arith.constant 0 : i32
    %71 = arith.cmpi sgt, %arg0, %c0_i32_31 : i32
    %72 = arith.extui %71 : i1 to i32
    %c0_i32_32 = arith.constant 0 : i32
    %73 = arith.cmpi ne, %72, %c0_i32_32 : i32
    scf.if %73 {
      %c0_33 = arith.constant 0 : index
      %c0_34 = arith.constant 0 : index
      %74 = vector.load %arg8[%c0_33, %c0_34] : memref<128x256xf32, #tpu.memory_space<vmem>>, vector<128x256xf32>
      %75 = arith.addf %74, %67 : vector<128x256xf32>
      %c0_35 = arith.constant 0 : index
      %c0_36 = arith.constant 0 : index
      %76 = vector.load %arg8[%c0_35, %c0_36] : memref<128x256xf32, #tpu.memory_space<vmem>>, vector<128x256xf32>
      tpu.vector_store %arg8[%c0_35, %c0_36], %75 {strides = array<i32>} : memref<128x256xf32, #tpu.memory_space<vmem>>, vector<128x256xf32>,
    } else {
    }
    return
  }
  func.func @transform_0(%arg0: i32) -> (i32, i32) {
    %c0_i32 = arith.constant 0 : i32
    %c0_i32_0 = arith.constant 0 : i32
    %c0_i32_1 = arith.constant 0 : i32
    return %c0_i32, %c0_i32_0 : i32, i32
  }
  func.func @transform_1(%arg0: i32) -> (i32, i32) {
    %c0_i32 = arith.constant 0 : i32
    %c0_i32_0 = arith.constant 0 : i32
    %c0_i32_1 = arith.constant 0 : i32
    return %c0_i32, %c0_i32_0 : i32, i32
  }
  func.func @transform_2(%arg0: i32) -> (i32, i32) {
    %c0_i32 = arith.constant 0 : i32
    %c0_i32_0 = arith.constant 0 : i32
    return %c0_i32, %arg0 : i32, i32
  }
  func.func @transform_3(%arg0: i32) -> (i32, i32) {
    %c0_i32 = arith.constant 0 : i32
    %c0_i32_0 = arith.constant 0 : i32
    return %c0_i32, %arg0 : i32, i32
  }
  func.func @transform_4(%arg0: i32) -> (i32, i32) {
    %c0_i32 = arith.constant 0 : i32
    %c0_i32_0 = arith.constant 0 : i32
    return %c0_i32, %arg0 : i32, i32
  }
  func.func @transform_5(%arg0: i32) -> (i32, i32) {
    %c0_i32 = arith.constant 0 : i32
    %c0_i32_0 = arith.constant 0 : i32
    return %arg0, %c0_i32 : i32, i32
  }
  func.func @transform_6(%arg0: i32) -> (i32, i32) {
    %c0_i32 = arith.constant 0 : i32
    %c0_i32_0 = arith.constant 0 : i32
    %c0_i32_1 = arith.constant 0 : i32
    return %c0_i32, %c0_i32_0 : i32, i32
  }
  func.func @transform_7(%arg0: i32) -> (i32, i32) {
    %c0_i32 = arith.constant 0 : i32
    %c0_i32_0 = arith.constant 0 : i32
    %c0_i32_1 = arith.constant 0 : i32
    return %c0_i32, %c0_i32_0 : i32, i32
  }
}

</mosaic_0001>

<llo_original>
// kernel: tpu_custom_call.1
$region0: #{tpu_custom_call.1}
  #allocation0 [shape = 'u32[]', space=smem, size = 0x4, offset = 0x4, fixed_abs, tag = 'smem constant byte address 0x4 - core index']
  #allocation1 [shape = 'u32[72,128]{1,0:T(1,128)}', space=vmem, size = 0x9000, scoped, tag = 'internal scratch']
  %s0 = inlined_call_operand.hbm [shape: f32[64,256], index: 0, kind: input, shape index: {}]
  %s1 = inlined_call_operand.hbm [shape: f32[64,256], index: 1, kind: input, shape index: {}]
  %s2 = inlined_call_operand.hbm [shape: bf16[256,256], index: 2, kind: input, shape index: {}]
  %s3 = inlined_call_operand.vmem [shape: f32[1,256], index: 3, kind: input, shape index: {}]
  %s4 = inlined_call_operand.hbm [shape: f32[1,256], index: 4, kind: input, shape index: {}]
  %s5 = inlined_call_operand.hbm [shape: bf16[256,256], index: 5, kind: input, shape index: {}]
  %s6 = inlined_call_operand.vmem [shape: f32[1,256], index: 6, kind: input, shape index: {}]
  %s7 = inlined_call_operand.hbm [shape: f32[128,256], index: 7, kind: output, shape index: {}]
  %s8 = sld [smem:[#allocation0]]
  $region66: #{tpu_custom_call.1} parent=0
    _
  %s10 = ssub.s32 1, %s8
  %s11 = scalar_select 0, %s10, %s8
  $region1: #{tpu_custom_call.1} parent=0
    #allocation2 [shape = 'u8[65536]{0}', space=vmem, size = 0x10000, scoped, tag = 'input window, operand 0, single buffered']
    #allocation3 [shape = 's32[1]{0}', space=sflag, size = 0x4, scoped, tag = 'scoped memory for tpu_custom_call.1']
    #allocation4 [shape = 's32[1]{0}', space=sflag, size = 0x4, scoped, tag = 'scoped memory for tpu_custom_call.1']
    #allocation5 [shape = 'u8[65536]{0}', space=vmem, size = 0x10000, scoped, tag = 'input window, operand 1, single buffered']
    #allocation6 [shape = 's32[1]{0}', space=sflag, size = 0x4, scoped, tag = 'scoped memory for tpu_custom_call.1']
    #allocation7 [shape = 'u8[131072]{0}', space=vmem, size = 0x20000, scoped, tag = 'input window, operand 2, single buffered']
    #allocation8 [shape = 'u8[1024]{0}', space=vmem, size = 0x400, scoped, tag = 'input window, operand 4, single buffered']
    #allocation9 [shape = 's32[1]{0}', space=sflag, size = 0x4, scoped, tag = 'scoped memory for tpu_custom_call.1']
    #allocation10 [shape = 'u8[131072]{0}', space=vmem, size = 0x20000, scoped, tag = 'input window, operand 5, single buffered']
    #allocation11 [shape = 'u8[131072]{0}', space=vmem, size = 0x20000, scoped, tag = 'output window, operand 0, single buffered']
    %12 = vsyncpa [#allocation3], 0
    %13 = vsyncpa [#allocation6], 0
    %14 = vsyncpa [#allocation9], 0
    %15 = vsyncpa [#allocation4], 0
    // Predicated region
    $region2: #{tpu_custom_call.1} parent=1 // pred_check
      _
    $region3: #{tpu_custom_call.1} parent=1 // pred_check_branch
      %17 = sbr.rel (0) target = $region5
    $region4: #{tpu_custom_call.1} parent=1 // pred_region
      %19 = vsyncadd [#allocation3], 0
      %s20 = sshll.u32 %s0, 4
      %s21 = int_to_ptr.hbm [resolvable:$true] %s20
      %s22 = sshll.u32 [#allocation2], 4
      %s23 = int_to_ptr.vmem [resolvable:$true] %s22
      %28 = dma.hbm_to_vmem [thread:$0]  %s21, 2048, %s23, [#allocation3], 256, 256, 16
    $region5: #{tpu_custom_call.1} parent=1 // pred_fallthru
      _
    // Predicated region
    $region6: #{tpu_custom_call.1} parent=1 // pred_check
      _
    $region7: #{tpu_custom_call.1} parent=1 // pred_check_branch
      %30 = sbr.rel (0) target = $region9
    $region8: #{tpu_custom_call.1} parent=1 // pred_region
      %32 = vsyncadd [#allocation6], 0
      %s33 = sshll.u32 %s1, 4
      %s34 = int_to_ptr.hbm [resolvable:$true] %s33
      %s35 = sshll.u32 [#allocation5], 4
      %s36 = int_to_ptr.vmem [resolvable:$true] %s35
      %41 = dma.hbm_to_vmem [thread:$0]  %s34, 2048, %s36, [#allocation6], 256, 256, 16
    $region9: #{tpu_custom_call.1} parent=1 // pred_fallthru
      _
    // Predicated region
    $region10: #{tpu_custom_call.1} parent=1 // pred_check
      _
    $region11: #{tpu_custom_call.1} parent=1 // pred_check_branch
      %43 = sbr.rel (0) target = $region13
    $region12: #{tpu_custom_call.1} parent=1 // pred_region
      %45 = vsyncadd [#allocation6], 0
      %s46 = sshll.u32 %s2, 4
      %s47 = int_to_ptr.hbm [resolvable:$true] %s46
      %s48 = sshll.u32 [#allocation7], 4
      %s49 = int_to_ptr.vmem [resolvable:$true] %s48
      %54 = dma.hbm_to_vmem [thread:$0]  %s47, 4096, %s49, [#allocation6], 128, 128, 8
    $region13: #{tpu_custom_call.1} parent=1 // pred_fallthru
      _
    // Predicated region
    $region14: #{tpu_custom_call.1} parent=1 // pred_check
      _
    $region15: #{tpu_custom_call.1} parent=1 // pred_check_branch
      %56 = sbr.rel (0) target = $region17
    $region16: #{tpu_custom_call.1} parent=1 // pred_region
      _
    $region17: #{tpu_custom_call.1} parent=1 // pred_fallthru
      _
    // Predicated region
    $region18: #{tpu_custom_call.1} parent=1 // pred_check
      _
    $region19: #{tpu_custom_call.1} parent=1 // pred_check_branch
      %58 = sbr.rel (0) target = $region21
    $region20: #{tpu_custom_call.1} parent=1 // pred_region
      %60 = vsyncadd [#allocation9], 0
      %s62 = sshll.u32 %s4, 4
      %s63 = int_to_ptr.hbm [resolvable:$true] %s62
      %s64 = sshll.u32 [#allocation8], 4
      %s65 = int_to_ptr.vmem [resolvable:$true] %s64
      %67 = dma.hbm_to_vmem [thread:$0]  %s63, 32, %s65, [#allocation9]
    $region21: #{tpu_custom_call.1} parent=1 // pred_fallthru
      _
    // Predicated region
    $region22: #{tpu_custom_call.1} parent=1 // pred_check
      _
    $region23: #{tpu_custom_call.1} parent=1 // pred_check_branch
      %69 = sbr.rel (0) target = $region25
    $region24: #{tpu_custom_call.1} parent=1 // pred_region
      %71 = vsyncadd [#allocation9], 0
      %s72 = sshll.u32 %s5, 4
      %s73 = int_to_ptr.hbm [resolvable:$true] %s72
      %s74 = sshll.u32 [#allocation10], 4
      %s75 = int_to_ptr.vmem [resolvable:$true] %s74
      %80 = dma.hbm_to_vmem [thread:$0]  %s73, 4096, %s75, [#allocation9], 128, 128, 8
    $region25: #{tpu_custom_call.1} parent=1 // pred_fallthru
      _
    // Predicated region
    $region26: #{tpu_custom_call.1} parent=1 // pred_check
      _
    $region27: #{tpu_custom_call.1} parent=1 // pred_check_branch
      %82 = sbr.rel (0) target = $region29
    $region28: #{tpu_custom_call.1} parent=1 // pred_region
      _
    $region29: #{tpu_custom_call.1} parent=1 // pred_fallthru
      _
    // Predicated region
    $region30: #{tpu_custom_call.1} parent=1 // pred_check
      _
    $region31: #{tpu_custom_call.1} parent=1 // pred_check_branch
      %84 = sbr.rel (0) target = $region33
    $region32: #{tpu_custom_call.1} parent=1 // pred_region
      %86 = dma.done [#allocation3], 2048
    $region33: #{tpu_custom_call.1} parent=1 // pred_fallthru
      _
    // Predicated region
    $region34: #{tpu_custom_call.1} parent=1 // pred_check
      _
    $region35: #{tpu_custom_call.1} parent=1 // pred_check_branch
      %88 = sbr.rel (0) target = $region37
    $region36: #{tpu_custom_call.1} parent=1 // pred_region
      %90 = dma.done [#allocation6], 2048
    $region37: #{tpu_custom_call.1} parent=1 // pred_fallthru
      _
    // Predicated region
    $region38: #{tpu_custom_call.1} parent=1 // pred_check
      _
    $region39: #{tpu_custom_call.1} parent=1 // pred_check_branch
      %92 = sbr.rel (0) target = $region41
    $region40: #{tpu_custom_call.1} parent=1 // pred_region
      %94 = dma.done [#allocation6], 4096
    $region41: #{tpu_custom_call.1} parent=1 // pred_fallthru
      _
    // Predicated region
    $region42: #{tpu_custom_call.1} parent=1 // pred_check
      _
    $region43: #{tpu_custom_call.1} parent=1 // pred_check_branch
      %96 = sbr.rel (0) target = $region45
    $region44: #{tpu_custom_call.1} parent=1 // pred_region
      %98 = dma.done [#allocation9], 32
    $region45: #{tpu_custom_call.1} parent=1 // pred_fallthru
      _
    // Predicated region
    $region46: #{tpu_custom_call.1} parent=1 // pred_check
      _
    $region47: #{tpu_custom_call.1} parent=1 // pred_check_branch
      %100 = sbr.rel (0) target = $region49
    $region48: #{tpu_custom_call.1} parent=1 // pred_region
      %102 = dma.done [#allocation9], 4096
    $region49: #{tpu_custom_call.1} parent=1 // pred_fallthru
      _
    %v103 = vld [vmem:[#allocation2] sm:$0xff]
    %v104 = vld [vmem:[#allocation2 + $0x8] sm:$0xff]
    %v105 = vld [vmem:[#allocation2 + $0x10] sm:$0xff]
    %v106 = vld [vmem:[#allocation2 + $0x18] sm:$0xff]
    %v107 = vld [vmem:[#allocation2 + $0x20] sm:$0xff]
    %v108 = vld [vmem:[#allocation2 + $0x28] sm:$0xff]
    %v109 = vld [vmem:[#allocation2 + $0x30] sm:$0xff]
    %v110 = vld [vmem:[#allocation2 + $0x38] sm:$0xff]
    %v111 = vld [vmem:[#allocation2 + $0x40] sm:$0xff]
    %v112 = vld [vmem:[#allocation2 + $0x48] sm:$0xff]
    %v113 = vld [vmem:[#allocation2 + $0x50] sm:$0xff]
    %v114 = vld [vmem:[#allocation2 + $0x58] sm:$0xff]
    %v115 = vld [vmem:[#allocation2 + $0x60] sm:$0xff]
    %v116 = vld [vmem:[#allocation2 + $0x68] sm:$0xff]
    %v117 = vld [vmem:[#allocation2 + $0x70] sm:$0xff]
    %v118 = vld [vmem:[#allocation2 + $0x78] sm:$0xff]
    %v119 = vpack.c.bf16 %v104, %v103
    %v120 = vpack.c.bf16 %v106, %v105
    %v121 = vpack.c.bf16 %v108, %v107
    %v122 = vpack.c.bf16 %v110, %v109
    %v123 = vpack.c.bf16 %v112, %v111
    %v124 = vpack.c.bf16 %v114, %v113
    %v125 = vpack.c.bf16 %v116, %v115
    %v126 = vpack.c.bf16 %v118, %v117
    %v127 = vld [vmem:[#allocation5] sm:$0xff]
    %v128 = vld [vmem:[#allocation5 + $0x8] sm:$0xff]
    %v129 = vld [vmem:[#allocation5 + $0x10] sm:$0xff]
    %v130 = vld [vmem:[#allocation5 + $0x18] sm:$0xff]
    %v131 = vld [vmem:[#allocation5 + $0x20] sm:$0xff]
    %v132 = vld [vmem:[#allocation5 + $0x28] sm:$0xff]
    %v133 = vld [vmem:[#allocation5 + $0x30] sm:$0xff]
    %v134 = vld [vmem:[#allocation5 + $0x38] sm:$0xff]
    %v135 = vld [vmem:[#allocation5 + $0x40] sm:$0xff]
    %v136 = vld [vmem:[#allocation5 + $0x48] sm:$0xff]
    %v137 = vld [vmem:[#allocation5 + $0x50] sm:$0xff]
    %v138 = vld [vmem:[#allocation5 + $0x58] sm:$0xff]
    %v139 = vld [vmem:[#allocation5 + $0x60] sm:$0xff]
    %v140 = vld [vmem:[#allocation5 + $0x68] sm:$0xff]
    %v141 = vld [vmem:[#allocation5 + $0x70] sm:$0xff]
    %v142 = vld [vmem:[#allocation5 + $0x78] sm:$0xff]
    %v143 = vpack.c.bf16 %v128, %v127
    %v144 = vpack.c.bf16 %v130, %v129
    %v145 = vpack.c.bf16 %v132, %v131
    %v146 = vpack.c.bf16 %v134, %v133
    %v147 = vpack.c.bf16 %v136, %v135
    %v148 = vpack.c.bf16 %v138, %v137
    %v149 = vpack.c.bf16 %v140, %v139
    %v150 = vpack.c.bf16 %v142, %v141
    %v159 = vunpack.c.l.b16 %v119
    %v160 = vunpack.c.h.b16 %v119
    %v161 = vunpack.c.l.b16 %v120
    %v162 = vunpack.c.h.b16 %v120
    %v163 = vunpack.c.l.b16 %v121
    %v164 = vunpack.c.h.b16 %v121
    %v165 = vunpack.c.l.b16 %v122
    %v166 = vunpack.c.h.b16 %v122
    %v167 = vunpack.c.l.b16 %v123
    %v168 = vunpack.c.h.b16 %v123
    %v169 = vunpack.c.l.b16 %v124
    %v170 = vunpack.c.h.b16 %v124
    %v171 = vunpack.c.l.b16 %v125
    %v172 = vunpack.c.h.b16 %v125
    %v173 = vunpack.c.l.b16 %v126
    %v174 = vunpack.c.h.b16 %v126
    %v175 = vpack.c.b16 %v161, %v159
    %v176 = vpack.c.b16 %v162, %v160
    %v177 = vpack.c.b16 %v165, %v163
    %v178 = vpack.c.b16 %v166, %v164
    %v179 = vpack.c.b16 %v169, %v167
    %v180 = vpack.c.b16 %v170, %v168
    %v181 = vpack.c.b16 %v173, %v171
    %v182 = vpack.c.b16 %v174, %v172
    %v199 = vunpack.c.l.b16 %v143
    %v200 = vunpack.c.h.b16 %v143
    %v201 = vunpack.c.l.b16 %v144
    %v202 = vunpack.c.h.b16 %v144
    %v203 = vunpack.c.l.b16 %v145
    %v204 = vunpack.c.h.b16 %v145
    %v205 = vunpack.c.l.b16 %v146
    %v206 = vunpack.c.h.b16 %v146
    %v207 = vunpack.c.l.b16 %v147
    %v208 = vunpack.c.h.b16 %v147
    %v209 = vunpack.c.l.b16 %v148
    %v210 = vunpack.c.h.b16 %v148
    %v211 = vunpack.c.l.b16 %v149
    %v212 = vunpack.c.h.b16 %v149
    %v213 = vunpack.c.l.b16 %v150
    %v214 = vunpack.c.h.b16 %v150
    %v215 = vpack.c.b16 %v201, %v199
    %v216 = vpack.c.b16 %v202, %v200
    %v217 = vpack.c.b16 %v205, %v203
    %v218 = vpack.c.b16 %v206, %v204
    %v219 = vpack.c.b16 %v209, %v207
    %v220 = vpack.c.b16 %v210, %v208
    %v221 = vpack.c.b16 %v213, %v211
    %v222 = vpack.c.b16 %v214, %v212
    %v231 = vld [vmem:[#allocation7] sm:$0xff]
    %v232 = vld [vmem:[#allocation7 + $0x8] sm:$0xff]
    %v233 = vld [vmem:[#allocation7 + $0x10] sm:$0xff]
    %v234 = vld [vmem:[#allocation7 + $0x18] sm:$0xff]
    %v235 = vld [vmem:[#allocation7 + $0x20] sm:$0xff]
    %v236 = vld [vmem:[#allocation7 + $0x28] sm:$0xff]
    %v237 = vld [vmem:[#allocation7 + $0x30] sm:$0xff]
    %v238 = vld [vmem:[#allocation7 + $0x38] sm:$0xff]
    %v239 = vld [vmem:[#allocation7 + $0x40] sm:$0xff]
    %v240 = vld [vmem:[#allocation7 + $0x48] sm:$0xff]
    %v241 = vld [vmem:[#allocation7 + $0x50] sm:$0xff]
    %v242 = vld [vmem:[#allocation7 + $0x58] sm:$0xff]
    %v243 = vld [vmem:[#allocation7 + $0x60] sm:$0xff]
    %v244 = vld [vmem:[#allocation7 + $0x68] sm:$0xff]
    %v245 = vld [vmem:[#allocation7 + $0x70] sm:$0xff]
    %v246 = vld [vmem:[#allocation7 + $0x78] sm:$0xff]
    %v247 = vld [vmem:[#allocation7 + $0x80] sm:$0xff]
    %v248 = vld [vmem:[#allocation7 + $0x88] sm:$0xff]
    %v249 = vld [vmem:[#allocation7 + $0x90] sm:$0xff]
    %v250 = vld [vmem:[#allocation7 + $0x98] sm:$0xff]
    %v251 = vld [vmem:[#allocation7 + $0xa0] sm:$0xff]
    %v252 = vld [vmem:[#allocation7 + $0xa8] sm:$0xff]
    %v253 = vld [vmem:[#allocation7 + $0xb0] sm:$0xff]
    %v254 = vld [vmem:[#allocation7 + $0xb8] sm:$0xff]
    %v255 = vld [vmem:[#allocation7 + $0xc0] sm:$0xff]
    %v256 = vld [vmem:[#allocation7 + $0xc8] sm:$0xff]
    %v257 = vld [vmem:[#allocation7 + $0xd0] sm:$0xff]
    %v258 = vld [vmem:[#allocation7 + $0xd8] sm:$0xff]
    %v259 = vld [vmem:[#allocation7 + $0xe0] sm:$0xff]
    %v260 = vld [vmem:[#allocation7 + $0xe8] sm:$0xff]
    %v261 = vld [vmem:[#allocation7 + $0xf0] sm:$0xff]
    %v262 = vld [vmem:[#allocation7 + $0xf8] sm:$0xff]
    %v295 = vunpack.c.l.b16 %v231
    %v296 = vunpack.c.h.b16 %v231
    %v297 = vunpack.c.l.b16 %v232
    %v298 = vunpack.c.h.b16 %v232
    %v299 = vunpack.c.l.b16 %v233
    %v300 = vunpack.c.h.b16 %v233
    %v301 = vunpack.c.l.b16 %v234
    %v302 = vunpack.c.h.b16 %v234
    %v303 = vunpack.c.l.b16 %v235
    %v304 = vunpack.c.h.b16 %v235
    %v305 = vunpack.c.l.b16 %v236
    %v306 = vunpack.c.h.b16 %v236
    %v307 = vunpack.c.l.b16 %v237
    %v308 = vunpack.c.h.b16 %v237
    %v309 = vunpack.c.l.b16 %v238
    %v310 = vunpack.c.h.b16 %v238
    %v311 = vunpack.c.l.b16 %v239
    %v312 = vunpack.c.h.b16 %v239
    %v313 = vunpack.c.l.b16 %v240
    %v314 = vunpack.c.h.b16 %v240
    %v315 = vunpack.c.l.b16 %v241
    %v316 = vunpack.c.h.b16 %v241
    %v317 = vunpack.c.l.b16 %v242
    %v318 = vunpack.c.h.b16 %v242
    %v319 = vunpack.c.l.b16 %v243
    %v320 = vunpack.c.h.b16 %v243
    %v321 = vunpack.c.l.b16 %v244
    %v322 = vunpack.c.h.b16 %v244
    %v323 = vunpack.c.l.b16 %v245
    %v324 = vunpack.c.h.b16 %v245
    %v325 = vunpack.c.l.b16 %v246
    %v326 = vunpack.c.h.b16 %v246
    %v327 = vunpack.c.l.b16 %v247
    %v328 = vunpack.c.h.b16 %v247
    %v329 = vunpack.c.l.b16 %v248
    %v330 = vunpack.c.h.b16 %v248
    %v331 = vunpack.c.l.b16 %v249
    %v332 = vunpack.c.h.b16 %v249
    %v333 = vunpack.c.l.b16 %v250
    %v334 = vunpack.c.h.b16 %v250
    %v335 = vunpack.c.l.b16 %v251
    %v336 = vunpack.c.h.b16 %v251
    %v337 = vunpack.c.l.b16 %v252
    %v338 = vunpack.c.h.b16 %v252
    %v339 = vunpack.c.l.b16 %v253
    %v340 = vunpack.c.h.b16 %v253
    %v341 = vunpack.c.l.b16 %v254
    %v342 = vunpack.c.h.b16 %v254
    %v343 = vunpack.c.l.b16 %v255
    %v344 = vunpack.c.h.b16 %v255
    %v345 = vunpack.c.l.b16 %v256
    %v346 = vunpack.c.h.b16 %v256
    %v347 = vunpack.c.l.b16 %v257
    %v348 = vunpack.c.h.b16 %v257
    %v349 = vunpack.c.l.b16 %v258
    %v350 = vunpack.c.h.b16 %v258
    %v351 = vunpack.c.l.b16 %v259
    %v352 = vunpack.c.h.b16 %v259
    %v353 = vunpack.c.l.b16 %v260
    %v354 = vunpack.c.h.b16 %v260
    %v355 = vunpack.c.l.b16 %v261
    %v356 = vunpack.c.h.b16 %v261
    %v357 = vunpack.c.l.b16 %v262
    %v358 = vunpack.c.h.b16 %v262
    %v359 = vpack.c.b16 %v297, %v295
    %v360 = vpack.c.b16 %v298, %v296
    %v361 = vpack.c.b16 %v301, %v299
    %v362 = vpack.c.b16 %v302, %v300
    %v363 = vpack.c.b16 %v305, %v303
    %v364 = vpack.c.b16 %v306, %v304
    %v365 = vpack.c.b16 %v309, %v307
    %v366 = vpack.c.b16 %v310, %v308
    %v367 = vpack.c.b16 %v313, %v311
    %v368 = vpack.c.b16 %v314, %v312
    %v369 = vpack.c.b16 %v317, %v315
    %v370 = vpack.c.b16 %v318, %v316
    %v371 = vpack.c.b16 %v321, %v319
    %v372 = vpack.c.b16 %v322, %v320
    %v373 = vpack.c.b16 %v325, %v323
    %v374 = vpack.c.b16 %v326, %v324
    %v375 = vpack.c.b16 %v329, %v327
    %v376 = vpack.c.b16 %v330, %v328
    %v377 = vpack.c.b16 %v333, %v331
    %v378 = vpack.c.b16 %v334, %v332
    %v379 = vpack.c.b16 %v337, %v335
    %v380 = vpack.c.b16 %v338, %v336
    %v381 = vpack.c.b16 %v341, %v339
    %v382 = vpack.c.b16 %v342, %v340
    %v383 = vpack.c.b16 %v345, %v343
    %v384 = vpack.c.b16 %v346, %v344
    %v385 = vpack.c.b16 %v349, %v347
    %v386 = vpack.c.b16 %v350, %v348
    %v387 = vpack.c.b16 %v353, %v351
    %v388 = vpack.c.b16 %v354, %v352
    %v389 = vpack.c.b16 %v357, %v355
    %v390 = vpack.c.b16 %v358, %v356
    %423 = vmatpush.bf16.msra.mxu0 %v373
    %424 = vmatpush.bf16.msra.mxu0 %v371
    %425 = vmatpush.bf16.msra.mxu0 %v369
    %426 = vmatpush.bf16.msra.mxu0 %v367
    %427 = vmatpush.bf16.msra.mxu0 %v365
    %428 = vmatpush.bf16.msra.mxu0 %v363
    %429 = vmatpush.bf16.msra.mxu0 %v361
    %430 = vmatpush.bf16.msra.mxu0 %v359
    %431 = vmatmul.bf16.gmra.mxu0 %v175
    %v432 = vpop.f32.mrf.mxu0
    %v433 = vadd.f32 0.0, %v432
    %v434 = vpop.f32.mrf.mxu0
    %v435 = vadd.f32 0.0, %v434
    %436 = vmatmul.bf16.gmra.mxu0 %v177
    %v437 = vpop.f32.mrf.mxu0
    %v438 = vadd.f32 0.0, %v437
    %v439 = vpop.f32.mrf.mxu0
    %v440 = vadd.f32 0.0, %v439
    %441 = vmatmul.bf16.gmra.mxu0 %v179
    %v442 = vpop.f32.mrf.mxu0
    %v443 = vadd.f32 0.0, %v442
    %v444 = vpop.f32.mrf.mxu0
    %v445 = vadd.f32 0.0, %v444
    %446 = vmatmul.bf16.gmra.mxu0 %v181
    %v447 = vpop.f32.mrf.mxu0
    %v448 = vadd.f32 0.0, %v447
    %v449 = vpop.f32.mrf.mxu0
    %v450 = vadd.f32 0.0, %v449
    %451 = vmatmul.bf16.gmra.mxu0 %v215
    %v452 = vpop.f32.mrf.mxu0
    %v453 = vadd.f32 0.0, %v452
    %v454 = vpop.f32.mrf.mxu0
    %v455 = vadd.f32 0.0, %v454
    %456 = vmatmul.bf16.gmra.mxu0 %v217
    %v457 = vpop.f32.mrf.mxu0
    %v458 = vadd.f32 0.0, %v457
    %v459 = vpop.f32.mrf.mxu0
    %v460 = vadd.f32 0.0, %v459
    %461 = vmatmul.bf16.gmra.mxu0 %v219
    %v462 = vpop.f32.mrf.mxu0
    %v463 = vadd.f32 0.0, %v462
    %v464 = vpop.f32.mrf.mxu0
    %v465 = vadd.f32 0.0, %v464
    %466 = vmatmul.bf16.gmra.mxu0 %v221
    %v467 = vpop.f32.mrf.mxu0
    %v468 = vadd.f32 0.0, %v467
    %v469 = vpop.f32.mrf.mxu0
    %v470 = vadd.f32 0.0, %v469
    %471 = vdwg.mxu0
    %472 = vmatpush.bf16.msra.mxu0 %v389
    %473 = vmatpush.bf16.msra.mxu0 %v387
    %474 = vmatpush.bf16.msra.mxu0 %v385
    %475 = vmatpush.bf16.msra.mxu0 %v383
    %476 = vmatpush.bf16.msra.mxu0 %v381
    %477 = vmatpush.bf16.msra.mxu0 %v379
    %478 = vmatpush.bf16.msra.mxu0 %v377
    %479 = vmatpush.bf16.msra.mxu0 %v375
    %480 = vmatmul.bf16.gmra.mxu0 %v176
    %v481 = vpop.f32.mrf.mxu0
    %v482 = vadd.f32 %v433, %v481
    %v483 = vpop.f32.mrf.mxu0
    %v484 = vadd.f32 %v435, %v483
    %485 = vmatmul.bf16.gmra.mxu0 %v178
    %v486 = vpop.f32.mrf.mxu0
    %v487 = vadd.f32 %v438, %v486
    %v488 = vpop.f32.mrf.mxu0
    %v489 = vadd.f32 %v440, %v488
    %490 = vmatmul.bf16.gmra.mxu0 %v180
    %v491 = vpop.f32.mrf.mxu0
    %v492 = vadd.f32 %v443, %v491
    %v493 = vpop.f32.mrf.mxu0
    %v494 = vadd.f32 %v445, %v493
    %495 = vmatmul.bf16.gmra.mxu0 %v182
    %v496 = vpop.f32.mrf.mxu0
    %v497 = vadd.f32 %v448, %v496
    %v498 = vpop.f32.mrf.mxu0
    %v499 = vadd.f32 %v450, %v498
    %500 = vmatmul.bf16.gmra.mxu0 %v216
    %v501 = vpop.f32.mrf.mxu0
    %v502 = vadd.f32 %v453, %v501
    %v503 = vpop.f32.mrf.mxu0
    %v504 = vadd.f32 %v455, %v503
    %505 = vmatmul.bf16.gmra.mxu0 %v218
    %v506 = vpop.f32.mrf.mxu0
    %v507 = vadd.f32 %v458, %v506
    %v508 = vpop.f32.mrf.mxu0
    %v509 = vadd.f32 %v460, %v508
    %510 = vmatmul.bf16.gmra.mxu0 %v220
    %v511 = vpop.f32.mrf.mxu0
    %v512 = vadd.f32 %v463, %v511
    %v513 = vpop.f32.mrf.mxu0
    %v514 = vadd.f32 %v465, %v513
    %515 = vmatmul.bf16.gmra.mxu0 %v222
    %v516 = vpop.f32.mrf.mxu0
    %v517 = vadd.f32 %v468, %v516
    %v518 = vpop.f32.mrf.mxu0
    %v519 = vadd.f32 %v470, %v518
    %520 = vdwg.mxu0
    %521 = vmatpush.bf16.msra.mxu0 %v374
    %522 = vmatpush.bf16.msra.mxu0 %v372
    %523 = vmatpush.bf16.msra.mxu0 %v370
    %524 = vmatpush.bf16.msra.mxu0 %v368
    %525 = vmatpush.bf16.msra.mxu0 %v366
    %526 = vmatpush.bf16.msra.mxu0 %v364
    %527 = vmatpush.bf16.msra.mxu0 %v362
    %528 = vmatpush.bf16.msra.mxu0 %v360
    %529 = vmatmul.bf16.gmra.mxu0 %v175
    %v530 = vpop.f32.mrf.mxu0
    %v531 = vadd.f32 0.0, %v530
    %v532 = vpop.f32.mrf.mxu0
    %v533 = vadd.f32 0.0, %v532
    %534 = vmatmul.bf16.gmra.mxu0 %v177
    %v535 = vpop.f32.mrf.mxu0
    %v536 = vadd.f32 0.0, %v535
    %v537 = vpop.f32.mrf.mxu0
    %v538 = vadd.f32 0.0, %v537
    %539 = vmatmul.bf16.gmra.mxu0 %v179
    %v540 = vpop.f32.mrf.mxu0
    %v541 = vadd.f32 0.0, %v540
    %v542 = vpop.f32.mrf.mxu0
    %v543 = vadd.f32 0.0, %v542
    %544 = vmatmul.bf16.gmra.mxu0 %v181
    %v545 = vpop.f32.mrf.mxu0
    %v546 = vadd.f32 0.0, %v545
    %v547 = vpop.f32.mrf.mxu0
    %v548 = vadd.f32 0.0, %v547
    %549 = vmatmul.bf16.gmra.mxu0 %v215
    %v550 = vpop.f32.mrf.mxu0
    %v551 = vadd.f32 0.0, %v550
    %v552 = vpop.f32.mrf.mxu0
    %v553 = vadd.f32 0.0, %v552
    %554 = vmatmul.bf16.gmra.mxu0 %v217
    %v555 = vpop.f32.mrf.mxu0
    %v556 = vadd.f32 0.0, %v555
    %v557 = vpop.f32.mrf.mxu0
    %v558 = vadd.f32 0.0, %v557
    %559 = vmatmul.bf16.gmra.mxu0 %v219
    %v560 = vpop.f32.mrf.mxu0
    %v561 = vadd.f32 0.0, %v560
    %v562 = vpop.f32.mrf.mxu0
    %v563 = vadd.f32 0.0, %v562
    %564 = vmatmul.bf16.gmra.mxu0 %v221
    %v565 = vpop.f32.mrf.mxu0
    %v566 = vadd.f32 0.0, %v565
    %v567 = vpop.f32.mrf.mxu0
    %v568 = vadd.f32 0.0, %v567
    %569 = vdwg.mxu0
    %570 = vmatpush.bf16.msra.mxu0 %v390
    %571 = vmatpush.bf16.msra.mxu0 %v388
    %572 = vmatpush.bf16.msra.mxu0 %v386
    %573 = vmatpush.bf16.msra.mxu0 %v384
    %574 = vmatpush.bf16.msra.mxu0 %v382
    %575 = vmatpush.bf16.msra.mxu0 %v380
    %576 = vmatpush.bf16.msra.mxu0 %v378
    %577 = vmatpush.bf16.msra.mxu0 %v376
    %578 = vmatmul.bf16.gmra.mxu0 %v176
    %v579 = vpop.f32.mrf.mxu0
    %v580 = vadd.f32 %v531, %v579
    %v581 = vpop.f32.mrf.mxu0
    %v582 = vadd.f32 %v533, %v581
    %583 = vmatmul.bf16.gmra.mxu0 %v178
    %v584 = vpop.f32.mrf.mxu0
    %v585 = vadd.f32 %v536, %v584
    %v586 = vpop.f32.mrf.mxu0
    %v587 = vadd.f32 %v538, %v586
    %588 = vmatmul.bf16.gmra.mxu0 %v180
    %v589 = vpop.f32.mrf.mxu0
    %v590 = vadd.f32 %v541, %v589
    %v591 = vpop.f32.mrf.mxu0
    %v592 = vadd.f32 %v543, %v591
    %593 = vmatmul.bf16.gmra.mxu0 %v182
    %v594 = vpop.f32.mrf.mxu0
    %v595 = vadd.f32 %v546, %v594
    %v596 = vpop.f32.mrf.mxu0
    %v597 = vadd.f32 %v548, %v596
    %598 = vmatmul.bf16.gmra.mxu0 %v216
    %v599 = vpop.f32.mrf.mxu0
    %v600 = vadd.f32 %v551, %v599
    %v601 = vpop.f32.mrf.mxu0
    %v602 = vadd.f32 %v553, %v601
    %603 = vmatmul.bf16.gmra.mxu0 %v218
    %v604 = vpop.f32.mrf.mxu0
    %v605 = vadd.f32 %v556, %v604
    %v606 = vpop.f32.mrf.mxu0
    %v607 = vadd.f32 %v558, %v606
    %608 = vmatmul.bf16.gmra.mxu0 %v220
    %v609 = vpop.f32.mrf.mxu0
    %v610 = vadd.f32 %v561, %v609
    %v611 = vpop.f32.mrf.mxu0
    %v612 = vadd.f32 %v563, %v611
    %613 = vmatmul.bf16.gmra.mxu0 %v222
    %v614 = vpop.f32.mrf.mxu0
    %v615 = vadd.f32 %v566, %v614
    %v616 = vpop.f32.mrf.mxu0
    %v617 = vadd.f32 %v568, %v616
    %618 = vdwg.mxu0
    %v619 = vadd.f32 %v482, %v484
    %v620 = vadd.f32 %v619, %v487
    %v621 = vadd.f32 %v620, %v489
    %v622 = vadd.f32 %v621, %v492
    %v623 = vadd.f32 %v622, %v494
    %v624 = vadd.f32 %v623, %v497
    %v625 = vadd.f32 %v624, %v499
    %v626 = vrot.slane %v625, 4
    %v627 = vadd.f32 %v625, %v626
    %v628 = vrot.slane %v627, 2
    %v629 = vadd.f32 %v627, %v628
    %v630 = vrot.slane %v629, 1
    %v631 = vadd.f32 %v629, %v630
    %v632 = vadd.f32 %v580, %v582
    %v633 = vadd.f32 %v632, %v585
    %v634 = vadd.f32 %v633, %v587
    %v635 = vadd.f32 %v634, %v590
    %v636 = vadd.f32 %v635, %v592
    %v637 = vadd.f32 %v636, %v595
    %v638 = vadd.f32 %v637, %v597
    %v639 = vrot.slane %v638, 4
    %v640 = vadd.f32 %v638, %v639
    %v641 = vrot.slane %v640, 2
    %v642 = vadd.f32 %v640, %v641
    %v643 = vrot.slane %v642, 1
    %v644 = vadd.f32 %v642, %v643
    %v645 = vrcp.pop 64.0
    %v646 = vmul.f32 64.0, %v645
    %v647 = vsub.f32 1.0, %v646
    %v648 = vmul.f32 %v645, %v647
    %v649 = vadd.f32 %v645, %v648
    %vm650 = vweird.f32 %v645
    %v651 = vsel %vm650, %v645, %v649
    %v652 = vmul.f32 %v631, %v651
    %v653 = vmul.f32 %v644, %v651
    %v654 = vmul.f32 %v482, %v482
    %v655 = vmul.f32 %v580, %v580
    %v656 = vmul.f32 %v484, %v484
    %v657 = vmul.f32 %v582, %v582
    %v658 = vmul.f32 %v487, %v487
    %v659 = vmul.f32 %v585, %v585
    %v660 = vmul.f32 %v489, %v489
    %v661 = vmul.f32 %v587, %v587
    %v662 = vmul.f32 %v492, %v492
    %v663 = vmul.f32 %v590, %v590
    %v664 = vmul.f32 %v494, %v494
    %v665 = vmul.f32 %v592, %v592
    %v666 = vmul.f32 %v497, %v497
    %v667 = vmul.f32 %v595, %v595
    %v668 = vmul.f32 %v499, %v499
    %v669 = vmul.f32 %v597, %v597
    %v670 = vadd.f32 %v654, %v656
    %v671 = vadd.f32 %v670, %v658
    %v672 = vadd.f32 %v671, %v660
    %v673 = vadd.f32 %v672, %v662
    %v674 = vadd.f32 %v673, %v664
    %v675 = vadd.f32 %v674, %v666
    %v676 = vadd.f32 %v675, %v668
    %v677 = vrot.slane %v676, 4
    %v678 = vadd.f32 %v676, %v677
    %v679 = vrot.slane %v678, 2
    %v680 = vadd.f32 %v678, %v679
    %v681 = vrot.slane %v680, 1
    %v682 = vadd.f32 %v680, %v681
    %v683 = vadd.f32 %v655, %v657
    %v684 = vadd.f32 %v683, %v659
    %v685 = vadd.f32 %v684, %v661
    %v686 = vadd.f32 %v685, %v663
    %v687 = vadd.f32 %v686, %v665
    %v688 = vadd.f32 %v687, %v667
    %v689 = vadd.f32 %v688, %v669
    %v690 = vrot.slane %v689, 4
    %v691 = vadd.f32 %v689, %v690
    %v692 = vrot.slane %v691, 2
    %v693 = vadd.f32 %v691, %v692
    %v694 = vrot.slane %v693, 1
    %v695 = vadd.f32 %v693, %v694
    %v696 = vmul.f32 %v682, %v651
    %v697 = vmul.f32 %v695, %v651
    %v698 = vmul.f32 %v652, %v652
    %v699 = vmul.f32 %v653, %v653
    %v700 = vsub.f32 %v696, %v698
    %v701 = vsub.f32 %v697, %v699
    %v702 = vmax.f32 %v700, 0.0
    %v703 = vmax.f32 %v701, 0.0
    %v704 = vld [vmem:[%s3] sm:$0x3]
    %v705 = vadd.f32 %v702, 1e-05
    %v706 = vadd.f32 %v703, 1e-05
    %v707 = vrsqrt.pop %v705
    %v708 = vmul.f32 %v707, %v705
    %v709 = vmul.f32 %v708, %v707
    %v710 = vmul.f32 0.5, %v709
    %v711 = vsub.f32 1.5, %v710
    %v712 = vmul.f32 %v707, %v711
    %vm713 = vweird.f32 %v705
    %vm714 = vweird.f32 %v707
    %vm715 = vmor %vm713, %vm714
    %v716 = vsel %vm715, %v707, %v712
    %v717 = vrsqrt.pop %v706
    %v718 = vmul.f32 %v717, %v706
    %v719 = vmul.f32 %v718, %v717
    %v720 = vmul.f32 0.5, %v719
    %v721 = vsub.f32 1.5, %v720
    %v722 = vmul.f32 %v717, %v721
    %vm723 = vweird.f32 %v706
    %vm724 = vweird.f32 %v717
    %vm725 = vmor %vm723, %vm724
    %v726 = vsel %vm725, %v717, %v722
    %v729 = vrot.slane %v726, 7
    %vm730 = vcmask 1040384
    %v731 = vsel %vm730, %v716, %v729
    %v733 = vmul.f32 %v704, %v731
    %v734 = vsub.f32 %v482, %v652
    %v735 = vsub.f32 %v580, %v653
    %v736 = vsub.f32 %v484, %v652
    %v737 = vsub.f32 %v582, %v653
    %v738 = vsub.f32 %v487, %v652
    %v739 = vsub.f32 %v585, %v653
    %v740 = vsub.f32 %v489, %v652
    %v741 = vsub.f32 %v587, %v653
    %v742 = vsub.f32 %v492, %v652
    %v743 = vsub.f32 %v590, %v653
    %v744 = vsub.f32 %v494, %v652
    %v745 = vsub.f32 %v592, %v653
    %v746 = vsub.f32 %v497, %v652
    %v747 = vsub.f32 %v595, %v653
    %v748 = vsub.f32 %v499, %v652
    %v749 = vsub.f32 %v597, %v653
    %v751 = vperm.slane %v733, 0
    %v752 = vperm.slane %v733, 1
    %v755 = vmul.f32 %v734, %v751
    %v756 = vmul.f32 %v735, %v752
    %v757 = vmul.f32 %v736, %v751
    %v758 = vmul.f32 %v737, %v752
    %v759 = vmul.f32 %v738, %v751
    %v760 = vmul.f32 %v739, %v752
    %v761 = vmul.f32 %v740, %v751
    %v762 = vmul.f32 %v741, %v752
    %v763 = vmul.f32 %v742, %v751
    %v764 = vmul.f32 %v743, %v752
    %v765 = vmul.f32 %v744, %v751
    %v766 = vmul.f32 %v745, %v752
    %v767 = vmul.f32 %v746, %v751
    %v768 = vmul.f32 %v747, %v752
    %v769 = vmul.f32 %v748, %v751
    %v770 = vmul.f32 %v749, %v752
    %v771 = vld [vmem:[#allocation8] sm:$0x3]
    %v773 = vperm.slane %v771, 0
    %v774 = vperm.slane %v771, 1
    %v777 = vadd.f32 %v755, %v773
    %v778 = vadd.f32 %v756, %v774
    %v779 = vadd.f32 %v757, %v773
    %v780 = vadd.f32 %v758, %v774
    %v781 = vadd.f32 %v759, %v773
    %v782 = vadd.f32 %v760, %v774
    %v783 = vadd.f32 %v761, %v773
    %v784 = vadd.f32 %v762, %v774
    %v785 = vadd.f32 %v763, %v773
    %v786 = vadd.f32 %v764, %v774
    %v787 = vadd.f32 %v765, %v773
    %v788 = vadd.f32 %v766, %v774
    %v789 = vadd.f32 %v767, %v773
    %v790 = vadd.f32 %v768, %v774
    %v791 = vadd.f32 %v769, %v773
    %v792 = vadd.f32 %v770, %v774
    %v793 = vmax.f32 %v777, 0.0
    %v794 = vmax.f32 %v778, 0.0
    %v795 = vmax.f32 %v779, 0.0
    %v796 = vmax.f32 %v780, 0.0
    %v797 = vmax.f32 %v781, 0.0
    %v798 = vmax.f32 %v782, 0.0
    %v799 = vmax.f32 %v783, 0.0
    %v800 = vmax.f32 %v784, 0.0
    %v801 = vmax.f32 %v785, 0.0
    %v802 = vmax.f32 %v786, 0.0
    %v803 = vmax.f32 %v787, 0.0
    %v804 = vmax.f32 %v788, 0.0
    %v805 = vmax.f32 %v789, 0.0
    %v806 = vmax.f32 %v790, 0.0
    %v807 = vmax.f32 %v791, 0.0
    %v808 = vmax.f32 %v792, 0.0
    %v809 = vpack.c.bf16 %v794, %v793
    %v810 = vpack.c.bf16 %v796, %v795
    %v811 = vpack.c.bf16 %v798, %v797
    %v812 = vpack.c.bf16 %v800, %v799
    %v813 = vpack.c.bf16 %v802, %v801
    %v814 = vpack.c.bf16 %v804, %v803
    %v815 = vpack.c.bf16 %v806, %v805
    %v816 = vpack.c.bf16 %v808, %v807
    %v817 = vadd.f32 %v502, %v504
    %v818 = vadd.f32 %v817, %v507
    %v819 = vadd.f32 %v818, %v509
    %v820 = vadd.f32 %v819, %v512
    %v821 = vadd.f32 %v820, %v514
    %v822 = vadd.f32 %v821, %v517
    %v823 = vadd.f32 %v822, %v519
    %v824 = vrot.slane %v823, 4
    %v825 = vadd.f32 %v823, %v824
    %v826 = vrot.slane %v825, 2
    %v827 = vadd.f32 %v825, %v826
    %v828 = vrot.slane %v827, 1
    %v829 = vadd.f32 %v827, %v828
    %v830 = vadd.f32 %v600, %v602
    %v831 = vadd.f32 %v830, %v605
    %v832 = vadd.f32 %v831, %v607
    %v833 = vadd.f32 %v832, %v610
    %v834 = vadd.f32 %v833, %v612
    %v835 = vadd.f32 %v834, %v615
    %v836 = vadd.f32 %v835, %v617
    %v837 = vrot.slane %v836, 4
    %v838 = vadd.f32 %v836, %v837
    %v839 = vrot.slane %v838, 2
    %v840 = vadd.f32 %v838, %v839
    %v841 = vrot.slane %v840, 1
    %v842 = vadd.f32 %v840, %v841
    %v843 = vmul.f32 %v829, %v651
    %v844 = vmul.f32 %v842, %v651
    %v845 = vmul.f32 %v502, %v502
    %v846 = vmul.f32 %v600, %v600
    %v847 = vmul.f32 %v504, %v504
    %v848 = vmul.f32 %v602, %v602
    %v849 = vmul.f32 %v507, %v507
    %v850 = vmul.f32 %v605, %v605
    %v851 = vmul.f32 %v509, %v509
    %v852 = vmul.f32 %v607, %v607
    %v853 = vmul.f32 %v512, %v512
    %v854 = vmul.f32 %v610, %v610
    %v855 = vmul.f32 %v514, %v514
    %v856 = vmul.f32 %v612, %v612
    %v857 = vmul.f32 %v517, %v517
    %v858 = vmul.f32 %v615, %v615
    %v859 = vmul.f32 %v519, %v519
    %v860 = vmul.f32 %v617, %v617
    %v861 = vadd.f32 %v845, %v847
    %v862 = vadd.f32 %v861, %v849
    %v863 = vadd.f32 %v862, %v851
    %v864 = vadd.f32 %v863, %v853
    %v865 = vadd.f32 %v864, %v855
    %v866 = vadd.f32 %v865, %v857
    %v867 = vadd.f32 %v866, %v859
    %v868 = vrot.slane %v867, 4
    %v869 = vadd.f32 %v867, %v868
    %v870 = vrot.slane %v869, 2
    %v871 = vadd.f32 %v869, %v870
    %v872 = vrot.slane %v871, 1
    %v873 = vadd.f32 %v871, %v872
    %v874 = vadd.f32 %v846, %v848
    %v875 = vadd.f32 %v874, %v850
    %v876 = vadd.f32 %v875, %v852
    %v877 = vadd.f32 %v876, %v854
    %v878 = vadd.f32 %v877, %v856
    %v879 = vadd.f32 %v878, %v858
    %v880 = vadd.f32 %v879, %v860
    %v881 = vrot.slane %v880, 4
    %v882 = vadd.f32 %v880, %v881
    %v883 = vrot.slane %v882, 2
    %v884 = vadd.f32 %v882, %v883
    %v885 = vrot.slane %v884, 1
    %v886 = vadd.f32 %v884, %v885
    %v887 = vmul.f32 %v873, %v651
    %v888 = vmul.f32 %v886, %v651
    %v889 = vmul.f32 %v843, %v843
    %v890 = vmul.f32 %v844, %v844
    %v891 = vsub.f32 %v887, %v889
    %v892 = vsub.f32 %v888, %v890
    %v893 = vmax.f32 %v891, 0.0
    %v894 = vmax.f32 %v892, 0.0
    %v895 = vadd.f32 %v893, 1e-05
    %v896 = vadd.f32 %v894, 1e-05
    %v897 = vrsqrt.pop %v895
    %v898 = vmul.f32 %v897, %v895
    %v899 = vmul.f32 %v898, %v897
    %v900 = vmul.f32 0.5, %v899
    %v901 = vsub.f32 1.5, %v900
    %v902 = vmul.f32 %v897, %v901
    %vm903 = vweird.f32 %v895
    %vm904 = vweird.f32 %v897
    %vm905 = vmor %vm903, %vm904
    %v906 = vsel %vm905, %v897, %v902
    %v907 = vrsqrt.pop %v896
    %v908 = vmul.f32 %v907, %v896
    %v909 = vmul.f32 %v908, %v907
    %v910 = vmul.f32 0.5, %v909
    %v911 = vsub.f32 1.5, %v910
    %v912 = vmul.f32 %v907, %v911
    %vm913 = vweird.f32 %v896
    %vm914 = vweird.f32 %v907
    %vm915 = vmor %vm913, %vm914
    %v916 = vsel %vm915, %v907, %v912
    %v919 = vrot.slane %v916, 7
    %v920 = vsel %vm730, %v906, %v919
    %v922 = vmul.f32 %v704, %v920
    %v923 = vsub.f32 %v502, %v843
    %v924 = vsub.f32 %v600, %v844
    %v925 = vsub.f32 %v504, %v843
    %v926 = vsub.f32 %v602, %v844
    %v927 = vsub.f32 %v507, %v843
    %v928 = vsub.f32 %v605, %v844
    %v929 = vsub.f32 %v509, %v843
    %v930 = vsub.f32 %v607, %v844
    %v931 = vsub.f32 %v512, %v843
    %v932 = vsub.f32 %v610, %v844
    %v933 = vsub.f32 %v514, %v843
    %v934 = vsub.f32 %v612, %v844
    %v935 = vsub.f32 %v517, %v843
    %v936 = vsub.f32 %v615, %v844
    %v937 = vsub.f32 %v519, %v843
    %v938 = vsub.f32 %v617, %v844
    %v940 = vperm.slane %v922, 0
    %v941 = vperm.slane %v922, 1
    %v944 = vmul.f32 %v923, %v940
    %v945 = vmul.f32 %v924, %v941
    %v946 = vmul.f32 %v925, %v940
    %v947 = vmul.f32 %v926, %v941
    %v948 = vmul.f32 %v927, %v940
    %v949 = vmul.f32 %v928, %v941
    %v950 = vmul.f32 %v929, %v940
    %v951 = vmul.f32 %v930, %v941
    %v952 = vmul.f32 %v931, %v940
    %v953 = vmul.f32 %v932, %v941
    %v954 = vmul.f32 %v933, %v940
    %v955 = vmul.f32 %v934, %v941
    %v956 = vmul.f32 %v935, %v940
    %v957 = vmul.f32 %v936, %v941
    %v958 = vmul.f32 %v937, %v940
    %v959 = vmul.f32 %v938, %v941
    %v960 = vadd.f32 %v944, %v773
    %v961 = vadd.f32 %v945, %v774
    %v962 = vadd.f32 %v946, %v773
    %v963 = vadd.f32 %v947, %v774
    %v964 = vadd.f32 %v948, %v773
    %v965 = vadd.f32 %v949, %v774
    %v966 = vadd.f32 %v950, %v773
    %v967 = vadd.f32 %v951, %v774
    %v968 = vadd.f32 %v952, %v773
    %v969 = vadd.f32 %v953, %v774
    %v970 = vadd.f32 %v954, %v773
    %v971 = vadd.f32 %v955, %v774
    %v972 = vadd.f32 %v956, %v773
    %v973 = vadd.f32 %v957, %v774
    %v974 = vadd.f32 %v958, %v773
    %v975 = vadd.f32 %v959, %v774
    %v976 = vmax.f32 %v960, 0.0
    %v977 = vmax.f32 %v961, 0.0
    %v978 = vmax.f32 %v962, 0.0
    %v979 = vmax.f32 %v963, 0.0
    %v980 = vmax.f32 %v964, 0.0
    %v981 = vmax.f32 %v965, 0.0
    %v982 = vmax.f32 %v966, 0.0
    %v983 = vmax.f32 %v967, 0.0
    %v984 = vmax.f32 %v968, 0.0
    %v985 = vmax.f32 %v969, 0.0
    %v986 = vmax.f32 %v970, 0.0
    %v987 = vmax.f32 %v971, 0.0
    %v988 = vmax.f32 %v972, 0.0
    %v989 = vmax.f32 %v973, 0.0
    %v990 = vmax.f32 %v974, 0.0
    %v991 = vmax.f32 %v975, 0.0
    %v992 = vpack.c.bf16 %v977, %v976
    %v993 = vpack.c.bf16 %v979, %v978
    %v994 = vpack.c.bf16 %v981, %v980
    %v995 = vpack.c.bf16 %v983, %v982
    %v996 = vpack.c.bf16 %v985, %v984
    %v997 = vpack.c.bf16 %v987, %v986
    %v998 = vpack.c.bf16 %v989, %v988
    %v999 = vpack.c.bf16 %v991, %v990
    %v1008 = vunpack.c.l.b16 %v809
    %v1009 = vunpack.c.h.b16 %v809
    %v1010 = vunpack.c.l.b16 %v810
    %v1011 = vunpack.c.h.b16 %v810
    %v1012 = vunpack.c.l.b16 %v811
    %v1013 = vunpack.c.h.b16 %v811
    %v1014 = vunpack.c.l.b16 %v812
    %v1015 = vunpack.c.h.b16 %v812
    %v1016 = vunpack.c.l.b16 %v813
    %v1017 = vunpack.c.h.b16 %v813
    %v1018 = vunpack.c.l.b16 %v814
    %v1019 = vunpack.c.h.b16 %v814
    %v1020 = vunpack.c.l.b16 %v815
    %v1021 = vunpack.c.h.b16 %v815
    %v1022 = vunpack.c.l.b16 %v816
    %v1023 = vunpack.c.h.b16 %v816
    %v1024 = vpack.c.b16 %v1010, %v1008
    %v1025 = vpack.c.b16 %v1011, %v1009
    %v1026 = vpack.c.b16 %v1014, %v1012
    %v1027 = vpack.c.b16 %v1015, %v1013
    %v1028 = vpack.c.b16 %v1018, %v1016
    %v1029 = vpack.c.b16 %v1019, %v1017
    %v1030 = vpack.c.b16 %v1022, %v1020
    %v1031 = vpack.c.b16 %v1023, %v1021
    %v1048 = vunpack.c.l.b16 %v992
    %v1049 = vunpack.c.h.b16 %v992
    %v1050 = vunpack.c.l.b16 %v993
    %v1051 = vunpack.c.h.b16 %v993
    %v1052 = vunpack.c.l.b16 %v994
    %v1053 = vunpack.c.h.b16 %v994
    %v1054 = vunpack.c.l.b16 %v995
    %v1055 = vunpack.c.h.b16 %v995
    %v1056 = vunpack.c.l.b16 %v996
    %v1057 = vunpack.c.h.b16 %v996
    %v1058 = vunpack.c.l.b16 %v997
    %v1059 = vunpack.c.h.b16 %v997
    %v1060 = vunpack.c.l.b16 %v998
    %v1061 = vunpack.c.h.b16 %v998
    %v1062 = vunpack.c.l.b16 %v999
    %v1063 = vunpack.c.h.b16 %v999
    %v1064 = vpack.c.b16 %v1050, %v1048
    %v1065 = vpack.c.b16 %v1051, %v1049
    %v1066 = vpack.c.b16 %v1054, %v1052
    %v1067 = vpack.c.b16 %v1055, %v1053
    %v1068 = vpack.c.b16 %v1058, %v1056
    %v1069 = vpack.c.b16 %v1059, %v1057
    %v1070 = vpack.c.b16 %v1062, %v1060
    %v1071 = vpack.c.b16 %v1063, %v1061
    %v1080 = vld [vmem:[#allocation10] sm:$0xff]
    %v1081 = vld [vmem:[#allocation10 + $0x8] sm:$0xff]
    %v1082 = vld [vmem:[#allocation10 + $0x10] sm:$0xff]
    %v1083 = vld [vmem:[#allocation10 + $0x18] sm:$0xff]
    %v1084 = vld [vmem:[#allocation10 + $0x20] sm:$0xff]
    %v1085 = vld [vmem:[#allocation10 + $0x28] sm:$0xff]
    %v1086 = vld [vmem:[#allocation10 + $0x30] sm:$0xff]
    %v1087 = vld [vmem:[#allocation10 + $0x38] sm:$0xff]
    %v1088 = vld [vmem:[#allocation10 + $0x40] sm:$0xff]
    %v1089 = vld [vmem:[#allocation10 + $0x48] sm:$0xff]
    %v1090 = vld [vmem:[#allocation10 + $0x50] sm:$0xff]
    %v1091 = vld [vmem:[#allocation10 + $0x58] sm:$0xff]
    %v1092 = vld [vmem:[#allocation10 + $0x60] sm:$0xff]
    %v1093 = vld [vmem:[#allocation10 + $0x68] sm:$0xff]
    %v1094 = vld [vmem:[#allocation10 + $0x70] sm:$0xff]
    %v1095 = vld [vmem:[#allocation10 + $0x78] sm:$0xff]
    %v1096 = vld [vmem:[#allocation10 + $0x80] sm:$0xff]
    %v1097 = vld [vmem:[#allocation10 + $0x88] sm:$0xff]
    %v1098 = vld [vmem:[#allocation10 + $0x90] sm:$0xff]
    %v1099 = vld [vmem:[#allocation10 + $0x98] sm:$0xff]
    %v1100 = vld [vmem:[#allocation10 + $0xa0] sm:$0xff]
    %v1101 = vld [vmem:[#allocation10 + $0xa8] sm:$0xff]
    %v1102 = vld [vmem:[#allocation10 + $0xb0] sm:$0xff]
    %v1103 = vld [vmem:[#allocation10 + $0xb8] sm:$0xff]
    %v1104 = vld [vmem:[#allocation10 + $0xc0] sm:$0xff]
    %v1105 = vld [vmem:[#allocation10 + $0xc8] sm:$0xff]
    %v1106 = vld [vmem:[#allocation10 + $0xd0] sm:$0xff]
    %v1107 = vld [vmem:[#allocation10 + $0xd8] sm:$0xff]
    %v1108 = vld [vmem:[#allocation10 + $0xe0] sm:$0xff]
    %v1109 = vld [vmem:[#allocation10 + $0xe8] sm:$0xff]
    %v1110 = vld [vmem:[#allocation10 + $0xf0] sm:$0xff]
    %v1111 = vld [vmem:[#allocation10 + $0xf8] sm:$0xff]
    %v1144 = vunpack.c.l.b16 %v1080
    %v1145 = vunpack.c.h.b16 %v1080
    %v1146 = vunpack.c.l.b16 %v1081
    %v1147 = vunpack.c.h.b16 %v1081
    %v1148 = vunpack.c.l.b16 %v1082
    %v1149 = vunpack.c.h.b16 %v1082
    %v1150 = vunpack.c.l.b16 %v1083
    %v1151 = vunpack.c.h.b16 %v1083
    %v1152 = vunpack.c.l.b16 %v1084
    %v1153 = vunpack.c.h.b16 %v1084
    %v1154 = vunpack.c.l.b16 %v1085
    %v1155 = vunpack.c.h.b16 %v1085
    %v1156 = vunpack.c.l.b16 %v1086
    %v1157 = vunpack.c.h.b16 %v1086
    %v1158 = vunpack.c.l.b16 %v1087
    %v1159 = vunpack.c.h.b16 %v1087
    %v1160 = vunpack.c.l.b16 %v1088
    %v1161 = vunpack.c.h.b16 %v1088
    %v1162 = vunpack.c.l.b16 %v1089
    %v1163 = vunpack.c.h.b16 %v1089
    %v1164 = vunpack.c.l.b16 %v1090
    %v1165 = vunpack.c.h.b16 %v1090
    %v1166 = vunpack.c.l.b16 %v1091
    %v1167 = vunpack.c.h.b16 %v1091
    %v1168 = vunpack.c.l.b16 %v1092
    %v1169 = vunpack.c.h.b16 %v1092
    %v1170 = vunpack.c.l.b16 %v1093
    %v1171 = vunpack.c.h.b16 %v1093
    %v1172 = vunpack.c.l.b16 %v1094
    %v1173 = vunpack.c.h.b16 %v1094
    %v1174 = vunpack.c.l.b16 %v1095
    %v1175 = vunpack.c.h.b16 %v1095
    %v1176 = vunpack.c.l.b16 %v1096
    %v1177 = vunpack.c.h.b16 %v1096
    %v1178 = vunpack.c.l.b16 %v1097
    %v1179 = vunpack.c.h.b16 %v1097
    %v1180 = vunpack.c.l.b16 %v1098
    %v1181 = vunpack.c.h.b16 %v1098
    %v1182 = vunpack.c.l.b16 %v1099
    %v1183 = vunpack.c.h.b16 %v1099
    %v1184 = vunpack.c.l.b16 %v1100
    %v1185 = vunpack.c.h.b16 %v1100
    %v1186 = vunpack.c.l.b16 %v1101
    %v1187 = vunpack.c.h.b16 %v1101
    %v1188 = vunpack.c.l.b16 %v1102
    %v1189 = vunpack.c.h.b16 %v1102
    %v1190 = vunpack.c.l.b16 %v1103
    %v1191 = vunpack.c.h.b16 %v1103
    %v1192 = vunpack.c.l.b16 %v1104
    %v1193 = vunpack.c.h.b16 %v1104
    %v1194 = vunpack.c.l.b16 %v1105
    %v1195 = vunpack.c.h.b16 %v1105
    %v1196 = vunpack.c.l.b16 %v1106
    %v1197 = vunpack.c.h.b16 %v1106
    %v1198 = vunpack.c.l.b16 %v1107
    %v1199 = vunpack.c.h.b16 %v1107
    %v1200 = vunpack.c.l.b16 %v1108
    %v1201 = vunpack.c.h.b16 %v1108
    %v1202 = vunpack.c.l.b16 %v1109
    %v1203 = vunpack.c.h.b16 %v1109
    %v1204 = vunpack.c.l.b16 %v1110
    %v1205 = vunpack.c.h.b16 %v1110
    %v1206 = vunpack.c.l.b16 %v1111
    %v1207 = vunpack.c.h.b16 %v1111
    %v1208 = vpack.c.b16 %v1146, %v1144
    %v1209 = vpack.c.b16 %v1147, %v1145
    %v1210 = vpack.c.b16 %v1150, %v1148
    %v1211 = vpack.c.b16 %v1151, %v1149
    %v1212 = vpack.c.b16 %v1154, %v1152
    %v1213 = vpack.c.b16 %v1155, %v1153
    %v1214 = vpack.c.b16 %v1158, %v1156
    %v1215 = vpack.c.b16 %v1159, %v1157
    %v1216 = vpack.c.b16 %v1162, %v1160
    %v1217 = vpack.c.b16 %v1163, %v1161
    %v1218 = vpack.c.b16 %v1166, %v1164
    %v1219 = vpack.c.b16 %v1167, %v1165
    %v1220 = vpack.c.b16 %v1170, %v1168
    %v1221 = vpack.c.b16 %v1171, %v1169
    %v1222 = vpack.c.b16 %v1174, %v1172
    %v1223 = vpack.c.b16 %v1175, %v1173
    %v1224 = vpack.c.b16 %v1178, %v1176
    %v1225 = vpack.c.b16 %v1179, %v1177
    %v1226 = vpack.c.b16 %v1182, %v1180
    %v1227 = vpack.c.b16 %v1183, %v1181
    %v1228 = vpack.c.b16 %v1186, %v1184
    %v1229 = vpack.c.b16 %v1187, %v1185
    %v1230 = vpack.c.b16 %v1190, %v1188
    %v1231 = vpack.c.b16 %v1191, %v1189
    %v1232 = vpack.c.b16 %v1194, %v1192
    %v1233 = vpack.c.b16 %v1195, %v1193
    %v1234 = vpack.c.b16 %v1198, %v1196
    %v1235 = vpack.c.b16 %v1199, %v1197
    %v1236 = vpack.c.b16 %v1202, %v1200
    %v1237 = vpack.c.b16 %v1203, %v1201
    %v1238 = vpack.c.b16 %v1206, %v1204
    %v1239 = vpack.c.b16 %v1207, %v1205
    %1272 = vmatpush.bf16.msra.mxu0 %v1222
    %1273 = vmatpush.bf16.msra.mxu0 %v1220
    %1274 = vmatpush.bf16.msra.mxu0 %v1218
    %1275 = vmatpush.bf16.msra.mxu0 %v1216
    %1276 = vmatpush.bf16.msra.mxu0 %v1214
    %1277 = vmatpush.bf16.msra.mxu0 %v1212
    %1278 = vmatpush.bf16.msra.mxu0 %v1210
    %1279 = vmatpush.bf16.msra.mxu0 %v1208
    %1280 = vmatmul.bf16.gmra.mxu0 %v1024
    %v1281 = vpop.f32.mrf.mxu0
    %v1282 = vadd.f32 0.0, %v1281
    %v1283 = vpop.f32.mrf.mxu0
    %v1284 = vadd.f32 0.0, %v1283
    %1285 = vmatmul.bf16.gmra.mxu0 %v1026
    %v1286 = vpop.f32.mrf.mxu0
    %v1287 = vadd.f32 0.0, %v1286
    %v1288 = vpop.f32.mrf.mxu0
    %v1289 = vadd.f32 0.0, %v1288
    %1290 = vmatmul.bf16.gmra.mxu0 %v1028
    %v1291 = vpop.f32.mrf.mxu0
    %v1292 = vadd.f32 0.0, %v1291
    %v1293 = vpop.f32.mrf.mxu0
    %v1294 = vadd.f32 0.0, %v1293
    %1295 = vmatmul.bf16.gmra.mxu0 %v1030
    %v1296 = vpop.f32.mrf.mxu0
    %v1297 = vadd.f32 0.0, %v1296
    %v1298 = vpop.f32.mrf.mxu0
    %v1299 = vadd.f32 0.0, %v1298
    %1300 = vmatmul.bf16.gmra.mxu0 %v1064
    %v1301 = vpop.f32.mrf.mxu0
    %v1302 = vadd.f32 0.0, %v1301
    %v1303 = vpop.f32.mrf.mxu0
    %v1304 = vadd.f32 0.0, %v1303
    %1305 = vmatmul.bf16.gmra.mxu0 %v1066
    %v1306 = vpop.f32.mrf.mxu0
    %v1307 = vadd.f32 0.0, %v1306
    %v1308 = vpop.f32.mrf.mxu0
    %v1309 = vadd.f32 0.0, %v1308
    %1310 = vmatmul.bf16.gmra.mxu0 %v1068
    %v1311 = vpop.f32.mrf.mxu0
    %v1312 = vadd.f32 0.0, %v1311
    %v1313 = vpop.f32.mrf.mxu0
    %v1314 = vadd.f32 0.0, %v1313
    %1315 = vmatmul.bf16.gmra.mxu0 %v1070
    %v1316 = vpop.f32.mrf.mxu0
    %v1317 = vadd.f32 0.0, %v1316
    %v1318 = vpop.f32.mrf.mxu0
    %v1319 = vadd.f32 0.0, %v1318
    %1320 = vdwg.mxu0
    %1321 = vmatpush.bf16.msra.mxu0 %v1238
    %1322 = vmatpush.bf16.msra.mxu0 %v1236
    %1323 = vmatpush.bf16.msra.mxu0 %v1234
    %1324 = vmatpush.bf16.msra.mxu0 %v1232
    %1325 = vmatpush.bf16.msra.mxu0 %v1230
    %1326 = vmatpush.bf16.msra.mxu0 %v1228
    %1327 = vmatpush.bf16.msra.mxu0 %v1226
    %1328 = vmatpush.bf16.msra.mxu0 %v1224
    %1329 = vmatmul.bf16.gmra.mxu0 %v1025
    %v1330 = vpop.f32.mrf.mxu0
    %v1331 = vadd.f32 %v1282, %v1330
    %v1332 = vpop.f32.mrf.mxu0
    %v1333 = vadd.f32 %v1284, %v1332
    %1334 = vmatmul.bf16.gmra.mxu0 %v1027
    %v1335 = vpop.f32.mrf.mxu0
    %v1336 = vadd.f32 %v1287, %v1335
    %v1337 = vpop.f32.mrf.mxu0
    %v1338 = vadd.f32 %v1289, %v1337
    %1339 = vmatmul.bf16.gmra.mxu0 %v1029
    %v1340 = vpop.f32.mrf.mxu0
    %v1341 = vadd.f32 %v1292, %v1340
    %v1342 = vpop.f32.mrf.mxu0
    %v1343 = vadd.f32 %v1294, %v1342
    %1344 = vmatmul.bf16.gmra.mxu0 %v1031
    %v1345 = vpop.f32.mrf.mxu0
    %v1346 = vadd.f32 %v1297, %v1345
    %v1347 = vpop.f32.mrf.mxu0
    %v1348 = vadd.f32 %v1299, %v1347
    %1349 = vmatmul.bf16.gmra.mxu0 %v1065
    %v1350 = vpop.f32.mrf.mxu0
    %v1351 = vadd.f32 %v1302, %v1350
    %v1352 = vpop.f32.mrf.mxu0
    %v1353 = vadd.f32 %v1304, %v1352
    %1354 = vmatmul.bf16.gmra.mxu0 %v1067
    %v1355 = vpop.f32.mrf.mxu0
    %v1356 = vadd.f32 %v1307, %v1355
    %v1357 = vpop.f32.mrf.mxu0
    %v1358 = vadd.f32 %v1309, %v1357
    %1359 = vmatmul.bf16.gmra.mxu0 %v1069
    %v1360 = vpop.f32.mrf.mxu0
    %v1361 = vadd.f32 %v1312, %v1360
    %v1362 = vpop.f32.mrf.mxu0
    %v1363 = vadd.f32 %v1314, %v1362
    %1364 = vmatmul.bf16.gmra.mxu0 %v1071
    %v1365 = vpop.f32.mrf.mxu0
    %v1366 = vadd.f32 %v1317, %v1365
    %v1367 = vpop.f32.mrf.mxu0
    %v1368 = vadd.f32 %v1319, %v1367
    %1369 = vdwg.mxu0
    %1370 = vmatpush.bf16.msra.mxu0 %v1223
    %1371 = vmatpush.bf16.msra.mxu0 %v1221
    %1372 = vmatpush.bf16.msra.mxu0 %v1219
    %1373 = vmatpush.bf16.msra.mxu0 %v1217
    %1374 = vmatpush.bf16.msra.mxu0 %v1215
    %1375 = vmatpush.bf16.msra.mxu0 %v1213
    %1376 = vmatpush.bf16.msra.mxu0 %v1211
    %1377 = vmatpush.bf16.msra.mxu0 %v1209
    %1378 = vmatmul.bf16.gmra.mxu0 %v1024
    %v1379 = vpop.f32.mrf.mxu0
    %v1380 = vadd.f32 0.0, %v1379
    %v1381 = vpop.f32.mrf.mxu0
    %v1382 = vadd.f32 0.0, %v1381
    %1383 = vmatmul.bf16.gmra.mxu0 %v1026
    %v1384 = vpop.f32.mrf.mxu0
    %v1385 = vadd.f32 0.0, %v1384
    %v1386 = vpop.f32.mrf.mxu0
    %v1387 = vadd.f32 0.0, %v1386
    %1388 = vmatmul.bf16.gmra.mxu0 %v1028
    %v1389 = vpop.f32.mrf.mxu0
    %v1390 = vadd.f32 0.0, %v1389
    %v1391 = vpop.f32.mrf.mxu0
    %v1392 = vadd.f32 0.0, %v1391
    %1393 = vmatmul.bf16.gmra.mxu0 %v1030
    %v1394 = vpop.f32.mrf.mxu0
    %v1395 = vadd.f32 0.0, %v1394
    %v1396 = vpop.f32.mrf.mxu0
    %v1397 = vadd.f32 0.0, %v1396
    %1398 = vmatmul.bf16.gmra.mxu0 %v1064
    %v1399 = vpop.f32.mrf.mxu0
    %v1400 = vadd.f32 0.0, %v1399
    %v1401 = vpop.f32.mrf.mxu0
    %v1402 = vadd.f32 0.0, %v1401
    %1403 = vmatmul.bf16.gmra.mxu0 %v1066
    %v1404 = vpop.f32.mrf.mxu0
    %v1405 = vadd.f32 0.0, %v1404
    %v1406 = vpop.f32.mrf.mxu0
    %v1407 = vadd.f32 0.0, %v1406
    %1408 = vmatmul.bf16.gmra.mxu0 %v1068
    %v1409 = vpop.f32.mrf.mxu0
    %v1410 = vadd.f32 0.0, %v1409
    %v1411 = vpop.f32.mrf.mxu0
    %v1412 = vadd.f32 0.0, %v1411
    %1413 = vmatmul.bf16.gmra.mxu0 %v1070
    %v1414 = vpop.f32.mrf.mxu0
    %v1415 = vadd.f32 0.0, %v1414
    %v1416 = vpop.f32.mrf.mxu0
    %v1417 = vadd.f32 0.0, %v1416
    %1418 = vdwg.mxu0
    %1419 = vmatpush.bf16.msra.mxu0 %v1239
    %1420 = vmatpush.bf16.msra.mxu0 %v1237
    %1421 = vmatpush.bf16.msra.mxu0 %v1235
    %1422 = vmatpush.bf16.msra.mxu0 %v1233
    %1423 = vmatpush.bf16.msra.mxu0 %v1231
    %1424 = vmatpush.bf16.msra.mxu0 %v1229
    %1425 = vmatpush.bf16.msra.mxu0 %v1227
    %1426 = vmatpush.bf16.msra.mxu0 %v1225
    %1427 = vmatmul.bf16.gmra.mxu0 %v1025
    %v1428 = vpop.f32.mrf.mxu0
    %v1429 = vadd.f32 %v1380, %v1428
    %v1430 = vpop.f32.mrf.mxu0
    %v1431 = vadd.f32 %v1382, %v1430
    %1432 = vmatmul.bf16.gmra.mxu0 %v1027
    %v1433 = vpop.f32.mrf.mxu0
    %v1434 = vadd.f32 %v1385, %v1433
    %v1435 = vpop.f32.mrf.mxu0
    %v1436 = vadd.f32 %v1387, %v1435
    %1437 = vmatmul.bf16.gmra.mxu0 %v1029
    %v1438 = vpop.f32.mrf.mxu0
    %v1439 = vadd.f32 %v1390, %v1438
    %v1440 = vpop.f32.mrf.mxu0
    %v1441 = vadd.f32 %v1392, %v1440
    %1442 = vmatmul.bf16.gmra.mxu0 %v1031
    %v1443 = vpop.f32.mrf.mxu0
    %v1444 = vadd.f32 %v1395, %v1443
    %v1445 = vpop.f32.mrf.mxu0
    %v1446 = vadd.f32 %v1397, %v1445
    %1447 = vmatmul.bf16.gmra.mxu0 %v1065
    %v1448 = vpop.f32.mrf.mxu0
    %v1449 = vadd.f32 %v1400, %v1448
    %v1450 = vpop.f32.mrf.mxu0
    %v1451 = vadd.f32 %v1402, %v1450
    %1452 = vmatmul.bf16.gmra.mxu0 %v1067
    %v1453 = vpop.f32.mrf.mxu0
    %v1454 = vadd.f32 %v1405, %v1453
    %v1455 = vpop.f32.mrf.mxu0
    %v1456 = vadd.f32 %v1407, %v1455
    %1457 = vmatmul.bf16.gmra.mxu0 %v1069
    %v1458 = vpop.f32.mrf.mxu0
    %v1459 = vadd.f32 %v1410, %v1458
    %v1460 = vpop.f32.mrf.mxu0
    %v1461 = vadd.f32 %v1412, %v1460
    %1462 = vmatmul.bf16.gmra.mxu0 %v1071
    %v1463 = vpop.f32.mrf.mxu0
    %v1464 = vadd.f32 %v1415, %v1463
    %v1465 = vpop.f32.mrf.mxu0
    %v1466 = vadd.f32 %v1417, %v1465
    %1467 = vdwg.mxu0
    %p1468 = scmp.eq.s32.totalorder 0, 0
    // Predicated region
    $region50: #{tpu_custom_call.1} parent=1 // pred_check
      %p1469 = pneg %p1468
    $region51: #{tpu_custom_call.1} parent=1 // pred_check_branch
      %1471 = sbr.rel (%p1469) target = $region53
    $region52: #{tpu_custom_call.1} parent=1 // pred_region
      %v1472 = vld [vmem:[%s6] sm:$0x3]
      %v1474 = vperm.slane %v1472, 0
      %v1475 = vperm.slane %v1472, 1
      %v1478 = vadd.f32 %v1331, %v1474
      %v1479 = vadd.f32 %v1429, %v1475
      %v1480 = vadd.f32 %v1333, %v1474
      %v1481 = vadd.f32 %v1431, %v1475
      %v1482 = vadd.f32 %v1336, %v1474
      %v1483 = vadd.f32 %v1434, %v1475
      %v1484 = vadd.f32 %v1338, %v1474
      %v1485 = vadd.f32 %v1436, %v1475
      %v1486 = vadd.f32 %v1341, %v1474
      %v1487 = vadd.f32 %v1439, %v1475
      %v1488 = vadd.f32 %v1343, %v1474
      %v1489 = vadd.f32 %v1441, %v1475
      %v1490 = vadd.f32 %v1346, %v1474
      %v1491 = vadd.f32 %v1444, %v1475
      %v1492 = vadd.f32 %v1348, %v1474
      %v1493 = vadd.f32 %v1446, %v1475
      %v1494 = vadd.f32 %v1351, %v1474
      %v1495 = vadd.f32 %v1449, %v1475
      %v1496 = vadd.f32 %v1353, %v1474
      %v1497 = vadd.f32 %v1451, %v1475
      %v1498 = vadd.f32 %v1356, %v1474
      %v1499 = vadd.f32 %v1454, %v1475
      %v1500 = vadd.f32 %v1358, %v1474
      %v1501 = vadd.f32 %v1456, %v1475
      %v1502 = vadd.f32 %v1361, %v1474
      %v1503 = vadd.f32 %v1459, %v1475
      %v1504 = vadd.f32 %v1363, %v1474
      %v1505 = vadd.f32 %v1461, %v1475
      %v1506 = vadd.f32 %v1366, %v1474
      %v1507 = vadd.f32 %v1464, %v1475
      %v1508 = vadd.f32 %v1368, %v1474
      %v1509 = vadd.f32 %v1466, %v1475
      %1510 = vst [vmem:[#allocation11] sm:$0xff] %v1478
      %1511 = vst [vmem:[#allocation11 + $0x8] sm:$0xff] %v1479
      %1512 = vst [vmem:[#allocation11 + $0x10] sm:$0xff] %v1480
      %1513 = vst [vmem:[#allocation11 + $0x18] sm:$0xff] %v1481
      %1514 = vst [vmem:[#allocation11 + $0x20] sm:$0xff] %v1482
      %1515 = vst [vmem:[#allocation11 + $0x28] sm:$0xff] %v1483
      %1516 = vst [vmem:[#allocation11 + $0x30] sm:$0xff] %v1484
      %1517 = vst [vmem:[#allocation11 + $0x38] sm:$0xff] %v1485
      %1518 = vst [vmem:[#allocation11 + $0x40] sm:$0xff] %v1486
      %1519 = vst [vmem:[#allocation11 + $0x48] sm:$0xff] %v1487
      %1520 = vst [vmem:[#allocation11 + $0x50] sm:$0xff] %v1488
      %1521 = vst [vmem:[#allocation11 + $0x58] sm:$0xff] %v1489
      %1522 = vst [vmem:[#allocation11 + $0x60] sm:$0xff] %v1490
      %1523 = vst [vmem:[#allocation11 + $0x68] sm:$0xff] %v1491
      %1524 = vst [vmem:[#allocation11 + $0x70] sm:$0xff] %v1492
      %1525 = vst [vmem:[#allocation11 + $0x78] sm:$0xff] %v1493
      %1526 = vst [vmem:[#allocation11 + $0x80] sm:$0xff] %v1494
      %1527 = vst [vmem:[#allocation11 + $0x88] sm:$0xff] %v1495
      %1528 = vst [vmem:[#allocation11 + $0x90] sm:$0xff] %v1496
      %1529 = vst [vmem:[#allocation11 + $0x98] sm:$0xff] %v1497
      %1530 = vst [vmem:[#allocation11 + $0xa0] sm:$0xff] %v1498
      %1531 = vst [vmem:[#allocation11 + $0xa8] sm:$0xff] %v1499
      %1532 = vst [vmem:[#allocation11 + $0xb0] sm:$0xff] %v1500
      %1533 = vst [vmem:[#allocation11 + $0xb8] sm:$0xff] %v1501
      %1534 = vst [vmem:[#allocation11 + $0xc0] sm:$0xff] %v1502
      %1535 = vst [vmem:[#allocation11 + $0xc8] sm:$0xff] %v1503
      %1536 = vst [vmem:[#allocation11 + $0xd0] sm:$0xff] %v1504
      %1537 = vst [vmem:[#allocation11 + $0xd8] sm:$0xff] %v1505
      %1538 = vst [vmem:[#allocation11 + $0xe0] sm:$0xff] %v1506
      %1539 = vst [vmem:[#allocation11 + $0xe8] sm:$0xff] %v1507
      %1540 = vst [vmem:[#allocation11 + $0xf0] sm:$0xff] %v1508
      %1541 = vst [vmem:[#allocation11 + $0xf8] sm:$0xff] %v1509
    $region53: #{tpu_custom_call.1} parent=1 // pred_fallthru
      _
    %p1542 = scmp.gt.s32.totalorder 0, 0
    // Predicated region
    $region54: #{tpu_custom_call.1} parent=1 // pred_check
      %p1543 = pneg %p1542
    $region55: #{tpu_custom_call.1} parent=1 // pred_check_branch
      %1545 = sbr.rel (%p1543) target = $region57
    $region56: #{tpu_custom_call.1} parent=1 // pred_region
      %v1546 = vld [vmem:[#allocation11] sm:$0xff]
      %v1547 = vld [vmem:[#allocation11 + $0x8] sm:$0xff]
      %v1548 = vld [vmem:[#allocation11 + $0x10] sm:$0xff]
      %v1549 = vld [vmem:[#allocation11 + $0x18] sm:$0xff]
      %v1550 = vld [vmem:[#allocation11 + $0x20] sm:$0xff]
      %v1551 = vld [vmem:[#allocation11 + $0x28] sm:$0xff]
      %v1552 = vld [vmem:[#allocation11 + $0x30] sm:$0xff]
      %v1553 = vld [vmem:[#allocation11 + $0x38] sm:$0xff]
      %v1554 = vld [vmem:[#allocation11 + $0x40] sm:$0xff]
      %v1555 = vld [vmem:[#allocation11 + $0x48] sm:$0xff]
      %v1556 = vld [vmem:[#allocation11 + $0x50] sm:$0xff]
      %v1557 = vld [vmem:[#allocation11 + $0x58] sm:$0xff]
      %v1558 = vld [vmem:[#allocation11 + $0x60] sm:$0xff]
      %v1559 = vld [vmem:[#allocation11 + $0x68] sm:$0xff]
      %v1560 = vld [vmem:[#allocation11 + $0x70] sm:$0xff]
      %v1561 = vld [vmem:[#allocation11 + $0x78] sm:$0xff]
      %v1562 = vld [vmem:[#allocation11 + $0x80] sm:$0xff]
      %v1563 = vld [vmem:[#allocation11 + $0x88] sm:$0xff]
      %v1564 = vld [vmem:[#allocation11 + $0x90] sm:$0xff]
      %v1565 = vld [vmem:[#allocation11 + $0x98] sm:$0xff]
      %v1566 = vld [vmem:[#allocation11 + $0xa0] sm:$0xff]
      %v1567 = vld [vmem:[#allocation11 + $0xa8] sm:$0xff]
      %v1568 = vld [vmem:[#allocation11 + $0xb0] sm:$0xff]
      %v1569 = vld [vmem:[#allocation11 + $0xb8] sm:$0xff]
      %v1570 = vld [vmem:[#allocation11 + $0xc0] sm:$0xff]
      %v1571 = vld [vmem:[#allocation11 + $0xc8] sm:$0xff]
      %v1572 = vld [vmem:[#allocation11 + $0xd0] sm:$0xff]
      %v1573 = vld [vmem:[#allocation11 + $0xd8] sm:$0xff]
      %v1574 = vld [vmem:[#allocation11 + $0xe0] sm:$0xff]
      %v1575 = vld [vmem:[#allocation11 + $0xe8] sm:$0xff]
      %v1576 = vld [vmem:[#allocation11 + $0xf0] sm:$0xff]
      %v1577 = vld [vmem:[#allocation11 + $0xf8] sm:$0xff]
      %v1578 = vadd.f32 %v1546, %v1331
      %v1579 = vadd.f32 %v1547, %v1429
      %v1580 = vadd.f32 %v1548, %v1333
      %v1581 = vadd.f32 %v1549, %v1431
      %v1582 = vadd.f32 %v1550, %v1336
      %v1583 = vadd.f32 %v1551, %v1434
      %v1584 = vadd.f32 %v1552, %v1338
      %v1585 = vadd.f32 %v1553, %v1436
      %v1586 = vadd.f32 %v1554, %v1341
      %v1587 = vadd.f32 %v1555, %v1439
      %v1588 = vadd.f32 %v1556, %v1343
      %v1589 = vadd.f32 %v1557, %v1441
      %v1590 = vadd.f32 %v1558, %v1346
      %v1591 = vadd.f32 %v1559, %v1444
      %v1592 = vadd.f32 %v1560, %v1348
      %v1593 = vadd.f32 %v1561, %v1446
      %v1594 = vadd.f32 %v1562, %v1351
      %v1595 = vadd.f32 %v1563, %v1449
      %v1596 = vadd.f32 %v1564, %v1353
      %v1597 = vadd.f32 %v1565, %v1451
      %v1598 = vadd.f32 %v1566, %v1356
      %v1599 = vadd.f32 %v1567, %v1454
      %v1600 = vadd.f32 %v1568, %v1358
      %v1601 = vadd.f32 %v1569, %v1456
      %v1602 = vadd.f32 %v1570, %v1361
      %v1603 = vadd.f32 %v1571, %v1459
      %v1604 = vadd.f32 %v1572, %v1363
      %v1605 = vadd.f32 %v1573, %v1461
      %v1606 = vadd.f32 %v1574, %v1366
      %v1607 = vadd.f32 %v1575, %v1464
      %v1608 = vadd.f32 %v1576, %v1368
      %v1609 = vadd.f32 %v1577, %v1466
      %1610 = vst [vmem:[#allocation11] sm:$0xff] %v1578
      %1611 = vst [vmem:[#allocation11 + $0x8] sm:$0xff] %v1579
      %1612 = vst [vmem:[#allocation11 + $0x10] sm:$0xff] %v1580
      %1613 = vst [vmem:[#allocation11 + $0x18] sm:$0xff] %v1581
      %1614 = vst [vmem:[#allocation11 + $0x20] sm:$0xff] %v1582
      %1615 = vst [vmem:[#allocation11 + $0x28] sm:$0xff] %v1583
      %1616 = vst [vmem:[#allocation11 + $0x30] sm:$0xff] %v1584
      %1617 = vst [vmem:[#allocation11 + $0x38] sm:$0xff] %v1585
      %1618 = vst [vmem:[#allocation11 + $0x40] sm:$0xff] %v1586
      %1619 = vst [vmem:[#allocation11 + $0x48] sm:$0xff] %v1587
      %1620 = vst [vmem:[#allocation11 + $0x50] sm:$0xff] %v1588
      %1621 = vst [vmem:[#allocation11 + $0x58] sm:$0xff] %v1589
      %1622 = vst [vmem:[#allocation11 + $0x60] sm:$0xff] %v1590
      %1623 = vst [vmem:[#allocation11 + $0x68] sm:$0xff] %v1591
      %1624 = vst [vmem:[#allocation11 + $0x70] sm:$0xff] %v1592
      %1625 = vst [vmem:[#allocation11 + $0x78] sm:$0xff] %v1593
      %1626 = vst [vmem:[#allocation11 + $0x80] sm:$0xff] %v1594
      %1627 = vst [vmem:[#allocation11 + $0x88] sm:$0xff] %v1595
      %1628 = vst [vmem:[#allocation11 + $0x90] sm:$0xff] %v1596
      %1629 = vst [vmem:[#allocation11 + $0x98] sm:$0xff] %v1597
      %1630 = vst [vmem:[#allocation11 + $0xa0] sm:$0xff] %v1598
      %1631 = vst [vmem:[#allocation11 + $0xa8] sm:$0xff] %v1599
      %1632 = vst [vmem:[#allocation11 + $0xb0] sm:$0xff] %v1600
      %1633 = vst [vmem:[#allocation11 + $0xb8] sm:$0xff] %v1601
      %1634 = vst [vmem:[#allocation11 + $0xc0] sm:$0xff] %v1602
      %1635 = vst [vmem:[#allocation11 + $0xc8] sm:$0xff] %v1603
      %1636 = vst [vmem:[#allocation11 + $0xd0] sm:$0xff] %v1604
      %1637 = vst [vmem:[#allocation11 + $0xd8] sm:$0xff] %v1605
      %1638 = vst [vmem:[#allocation11 + $0xe0] sm:$0xff] %v1606
      %1639 = vst [vmem:[#allocation11 + $0xe8] sm:$0xff] %v1607
      %1640 = vst [vmem:[#allocation11 + $0xf0] sm:$0xff] %v1608
      %1641 = vst [vmem:[#allocation11 + $0xf8] sm:$0xff] %v1609
    $region57: #{tpu_custom_call.1} parent=1 // pred_fallthru
      _
    // Predicated region
    $region58: #{tpu_custom_call.1} parent=1 // pred_check
      _
    $region59: #{tpu_custom_call.1} parent=1 // pred_check_branch
      %1643 = sbr.rel (0) target = $region61
    $region60: #{tpu_custom_call.1} parent=1 // pred_region
      %1645 = vsyncadd [#allocation4], 0
      %s1646 = sshll.u32 [#allocation11], 4
      %s1647 = int_to_ptr.vmem [resolvable:$true] %s1646
      %s1648 = sshll.u32 %s7, 4
      %s1649 = int_to_ptr.hbm [resolvable:$true] %s1648
      %1654 = dma.vmem_to_hbm [thread:$0]  %s1647, 4096, %s1649, [#allocation4], 256, 256, 16
    $region61: #{tpu_custom_call.1} parent=1 // pred_fallthru
      _
    // Predicated region
    $region62: #{tpu_custom_call.1} parent=1 // pred_check
      _
    $region63: #{tpu_custom_call.1} parent=1 // pred_check_branch
      %1656 = sbr.rel (0) target = $region65
    $region64: #{tpu_custom_call.1} parent=1 // pred_region
      %1658 = dma.done [#allocation4], 4096
    $region65: #{tpu_custom_call.1} parent=1 // pred_fallthru
      _
    %1659 = vsyncpa [#allocation3], 1
    %1660 = vsyncpa [#allocation6], 1
    %1661 = vsyncpa [#allocation9], 1
    %1662 = vsyncpa [#allocation4], 1

</llo_original>
